<compile_context>
chip_gen: v7x
topology: tpu7x:2x2x1
jax: 0.10.0
libtpu: 0.0.40
codegen_flags: <defaults>
</compile_context>

<pallas_src>
import jax
import jax.numpy as jnp
from jax.experimental import pallas as pl
from jax.experimental.pallas import tpu as pltpu

STATE_DIM = 3    # Pendulum-v1 observation space
ACTION_DIM = 1   # Pendulum-v1 action space
HIDDEN = 128
MAX_TB = 2048    # batch (lane) tile cap; ~1 MiB per (H, TB) f32 activation


def _round_up(x, m):
    return ((x + m - 1) // m) * m


def _choose_tiling(B):
    """Pick (padded_batch, batch_tile) for the lane (batch) axis."""
    if B <= 256:
        # Single full-extent block: no 128-multiple requirement, no padding.
        return B, B
    b_pad = _round_up(B, 128)            # lane-aligned, at most 127 pad rows
    n_lane_blocks = b_pad // 128
    # Aim for >= 2 grid steps (v7x has 2 TensorCores) but keep steps large.
    tb = 128 * max(1, (n_lane_blocks + 1) // 2)
    tb = min(tb, MAX_TB)
    return b_pad, tb


def critic_kernel(st_ref, at_ref, w1s_ref, w1a_ref, b1_ref,
                  w2_ref, b2_ref, w3_ref, b3_ref, out_ref):
    st = st_ref[...]             # (state_dim, TB)   batch on lanes
    at = at_ref[...]             # (action_dim, TB)
    w1s = w1s_ref[...]           # (H, state_dim)
    w1a = w1a_ref[...]           # (H, action_dim)

    # fc1: K = state_dim + action_dim = 4 -> VPU broadcast FMAs, keep it off
    # the MXU.  (H,1) * (1,TB) broadcasts to (H,TB).
    h = b1_ref[...]              # (H, 1), broadcasts up on the first add
    for k in range(st.shape[0]):
        h = h + w1s[:, k:k + 1] * st[k:k + 1, :]
    for k in range(at.shape[0]):
        h = h + w1a[:, k:k + 1] * at[k:k + 1, :]
    h = jnp.maximum(h, 0.0)      # (H, TB)

    # fc2: the only real matmul -> MXU with f32 accumulation.
    h = jnp.dot(w2_ref[...], h, preferred_element_type=jnp.float32) + b2_ref[...]
    h = jnp.maximum(h, 0.0)      # (H, TB)

    # Output head: scale by the w3 column (sublane broadcast) and reduce over
    # sublanes (XLU) -> lane-dense (1, TB) store.  b3 is a scalar in SMEM.
    out_ref[...] = jnp.sum(h * w3_ref[...], axis=0, keepdims=True) + b3_ref[0]


def critic_forward(state, action, params):
    """state: [B, state_dim], action: [B, action_dim] -> value: [B, 1]."""
    w1_s, w1_a, b1, w2, b2, w3, b3 = params
    B = state.shape[0]
    state_dim = state.shape[1]
    action_dim = action.shape[1]
    hidden = w2.shape[0]

    b_pad, tb = _choose_tiling(B)
    grid = (pl.cdiv(b_pad, tb),)

    # Batch on lanes: pass inputs transposed (cheap layout plumbing in XLA).
    state_t = state.T                      # (state_dim, B)
    action_t = action.T                    # (action_dim, B)
    if b_pad != B:
        state_t = jnp.pad(state_t, ((0, 0), (0, b_pad - B)))
        action_t = jnp.pad(action_t, ((0, 0), (0, b_pad - B)))

    resident = lambda i: (0, 0)            # weights stay in VMEM across steps
    batch_tile = lambda i: (0, i)

    flops = 2 * b_pad * hidden * (hidden + state_dim + action_dim + 1)
    bytes_accessed = 4 * (
        b_pad * (state_dim + action_dim + 1)
        + hidden * (hidden + state_dim + action_dim + 3) + 1)

    out = pl.pallas_call(
        critic_kernel,
        out_shape=jax.ShapeDtypeStruct((1, b_pad), jnp.float32),
        grid=grid,
        in_specs=[
            pl.BlockSpec((state_dim, tb), batch_tile),           # state (T)
            pl.BlockSpec((action_dim, tb), batch_tile),          # action (T)
            pl.BlockSpec((hidden, state_dim), resident),         # fc1 W (state cols)
            pl.BlockSpec((hidden, action_dim), resident),        # fc1 W (action cols)
            pl.BlockSpec((hidden, 1), resident),                 # fc1 b (column)
            pl.BlockSpec((hidden, hidden), resident),            # fc2 W (out, in)
            pl.BlockSpec((hidden, 1), resident),                 # fc2 b (column)
            pl.BlockSpec((hidden, 1), resident),                 # output W (column)
            pl.BlockSpec(memory_space=pltpu.MemorySpace.SMEM),   # output b (scalar)
        ],
        out_specs=pl.BlockSpec((1, tb), batch_tile),             # lane-dense
        compiler_params=pltpu.CompilerParams(
            dimension_semantics=("parallel",)),
        cost_estimate=pl.CostEstimate(
            flops=flops, transcendentals=0, bytes_accessed=bytes_accessed),
    )(state_t, action_t, w1_s, w1_a, b1, w2, b2, w3, b3)

    return out[0, :B][:, None]             # (B, 1)


def init_params(key, state_dim=STATE_DIM, action_dim=ACTION_DIM, hidden=HIDDEN):
    """PyTorch nn.Linear-style init (U(-1/sqrt(fan_in), 1/sqrt(fan_in))),
    stored in the kernel layout: (out, in) weights, column biases, scalar b3."""
    in_dim = state_dim + action_dim
    ks = jax.random.split(key, 6)

    def uniform(k, shape, fan_in):
        bound = 1.0 / (fan_in ** 0.5)
        return jax.random.uniform(k, shape, jnp.float32, -bound, bound)

    w1 = uniform(ks[0], (hidden, in_dim), in_dim)   # fc1.weight (out, in)
    w1_s = w1[:, :state_dim]                        # (H, state_dim)
    w1_a = w1[:, state_dim:]                        # (H, action_dim)
    b1 = uniform(ks[1], (hidden, 1), in_dim)        # column bias
    w2 = uniform(ks[2], (hidden, hidden), hidden)   # fc2.weight (out, in)
    b2 = uniform(ks[3], (hidden, 1), hidden)
    w3 = uniform(ks[4], (hidden, 1), hidden)        # output.weight^T (column)
    b3 = uniform(ks[5], (1,), hidden)               # scalar bias (SMEM)
    return (w1_s, w1_a, b1, w2, b2, w3, b3)


def critic_ref(state, action, params):
    """Pure-JAX reference, identical math to the PyTorch module."""
    w1_s, w1_a, b1, w2, b2, w3, b3 = params
    w1 = jnp.concatenate([w1_s, w1_a], axis=1)      # (H, in_dim)
    x = jnp.concatenate([state, action], axis=1)    # (B, in_dim)
    h1 = jnp.maximum(x @ w1.T + b1[:, 0], 0.0)
    h2 = jnp.maximum(h1 @ w2.T + b2[:, 0], 0.0)
    return h2 @ w3 + b3                             # (B, 1)


if __name__ == "__main__":
    key = jax.random.PRNGKey(0)
    k_params, k_state, k_action = jax.random.split(key, 3)

    # B=384 exercises a 2-step "parallel" batch grid (tb=256) with a partial
    # boundary block and VMEM-resident weights.
    B = 384
    params = init_params(k_params)
    state = jax.random.normal(k_state, (B, STATE_DIM), jnp.float32)
    action = jax.random.normal(k_action, (B, ACTION_DIM), jnp.float32)

    value = jax.block_until_ready(critic_forward(state, action, params))
    ref = critic_ref(state, action, params)

    assert value.shape == (B, 1), value.shape
    assert jnp.allclose(value, ref, atol=1e-4, rtol=1e-4), (value, ref)

    print("KERNEL_OK")
</pallas_src>

<mosaic_0001>
module attributes {stable_mosaic.version = 11 : i64} {
  func.func @critic_kernel(%arg0: i32, %arg1: memref<3x256xf32, #tpu.memory_space<vmem>>, %arg2: memref<1x256xf32, #tpu.memory_space<vmem>>, %arg3: memref<128x3xf32, #tpu.memory_space<vmem>>, %arg4: memref<128x1xf32, #tpu.memory_space<vmem>>, %arg5: memref<128x1xf32, #tpu.memory_space<vmem>>, %arg6: memref<128x128xf32, #tpu.memory_space<vmem>>, %arg7: memref<128x1xf32, #tpu.memory_space<vmem>>, %arg8: memref<128x1xf32, #tpu.memory_space<vmem>>, %arg9: memref<1xf32, #tpu.memory_space<smem>>, %arg10: memref<1x256xf32, #tpu.memory_space<vmem>>) attributes {dimension_semantics = [#tpu.dimension_semantics<parallel>], iteration_bounds = array<i64: 2>, scalar_prefetch = 0 : i64, scratch_operands = 0 : i64, tpu.core_type = #tpu.core_type<tc>, window_params = [{transform_indices = @transform_0, window_bounds = array<i64: 3, 256>}, {transform_indices = @transform_1, window_bounds = array<i64: 1, 256>}, {pipeline_mode = #tpu.pipeline_mode<synchronous>, transform_indices = @transform_2, window_bounds = array<i64: 128, 3>}, {pipeline_mode = #tpu.pipeline_mode<synchronous>, transform_indices = @transform_3, window_bounds = array<i64: 128, 1>}, {pipeline_mode = #tpu.pipeline_mode<synchronous>, transform_indices = @transform_4, window_bounds = array<i64: 128, 1>}, {pipeline_mode = #tpu.pipeline_mode<synchronous>, transform_indices = @transform_5, window_bounds = array<i64: 128, 128>}, {pipeline_mode = #tpu.pipeline_mode<synchronous>, transform_indices = @transform_6, window_bounds = array<i64: 128, 1>}, {pipeline_mode = #tpu.pipeline_mode<synchronous>, transform_indices = @transform_7, window_bounds = array<i64: 128, 1>}, {transform_indices = @transform_8, window_bounds = array<i64: 1>}, {transform_indices = @transform_9, window_bounds = array<i64: 1, 256>}]} {
    %c0 = arith.constant 0 : index
    %c0_0 = arith.constant 0 : index
    %0 = vector.load %arg1[%c0, %c0_0] : memref<3x256xf32, #tpu.memory_space<vmem>>, vector<3x256xf32>
    %c0_1 = arith.constant 0 : index
    %c0_2 = arith.constant 0 : index
    %1 = vector.load %arg2[%c0_1, %c0_2] : memref<1x256xf32, #tpu.memory_space<vmem>>, vector<1x256xf32>
    %c0_3 = arith.constant 0 : index
    %c0_4 = arith.constant 0 : index
    %2 = vector.load %arg3[%c0_3, %c0_4] : memref<128x3xf32, #tpu.memory_space<vmem>>, vector<128x3xf32>
    %c0_5 = arith.constant 0 : index
    %c0_6 = arith.constant 0 : index
    %3 = vector.load %arg4[%c0_5, %c0_6] : memref<128x1xf32, #tpu.memory_space<vmem>>, vector<128x1xf32>
    %c0_7 = arith.constant 0 : index
    %c0_8 = arith.constant 0 : index
    %4 = vector.load %arg5[%c0_7, %c0_8] : memref<128x1xf32, #tpu.memory_space<vmem>>, vector<128x1xf32>
    %5 = vector.extract_strided_slice %2 {offsets = [0, 0], sizes = [128, 1], strides = [1, 1]} : vector<128x3xf32> to vector<128x1xf32>
    %6 = vector.extract_strided_slice %0 {offsets = [0, 0], sizes = [1, 256], strides = [1, 1]} : vector<3x256xf32> to vector<1x256xf32>
    %7 = vector.broadcast %5 : vector<128x1xf32> to vector<128x256xf32>
    %8 = vector.broadcast %6 : vector<1x256xf32> to vector<128x256xf32>
    %9 = arith.mulf %7, %8 : vector<128x256xf32>
    %10 = vector.broadcast %4 : vector<128x1xf32> to vector<128x256xf32>
    %11 = arith.addf %10, %9 : vector<128x256xf32>
    %12 = vector.extract_strided_slice %2 {offsets = [0, 1], sizes = [128, 1], strides = [1, 1]} : vector<128x3xf32> to vector<128x1xf32>
    %13 = vector.extract_strided_slice %0 {offsets = [1, 0], sizes = [1, 256], strides = [1, 1]} : vector<3x256xf32> to vector<1x256xf32>
    %14 = vector.broadcast %12 : vector<128x1xf32> to vector<128x256xf32>
    %15 = vector.broadcast %13 : vector<1x256xf32> to vector<128x256xf32>
    %16 = arith.mulf %14, %15 : vector<128x256xf32>
    %17 = arith.addf %11, %16 : vector<128x256xf32>
    %18 = vector.extract_strided_slice %2 {offsets = [0, 2], sizes = [128, 1], strides = [1, 1]} : vector<128x3xf32> to vector<128x1xf32>
    %19 = vector.extract_strided_slice %0 {offsets = [2, 0], sizes = [1, 256], strides = [1, 1]} : vector<3x256xf32> to vector<1x256xf32>
    %20 = vector.broadcast %18 : vector<128x1xf32> to vector<128x256xf32>
    %21 = vector.broadcast %19 : vector<1x256xf32> to vector<128x256xf32>
    %22 = arith.mulf %20, %21 : vector<128x256xf32>
    %23 = arith.addf %17, %22 : vector<128x256xf32>
    %24 = vector.broadcast %3 : vector<128x1xf32> to vector<128x256xf32>
    %25 = vector.broadcast %1 : vector<1x256xf32> to vector<128x256xf32>
    %26 = arith.mulf %24, %25 : vector<128x256xf32>
    %27 = arith.addf %23, %26 : vector<128x256xf32>
    %cst = arith.constant 0.000000e+00 : f32
    %28 = vector.broadcast %cst : f32 to vector<128x256xf32>
    %29 = arith.maximumf %27, %28 : vector<128x256xf32>
    %c0_9 = arith.constant 0 : index
    %c0_10 = arith.constant 0 : index
    %30 = vector.load %arg6[%c0_9, %c0_10] : memref<128x128xf32, #tpu.memory_space<vmem>>, vector<128x128xf32>
    %cst_11 = arith.constant dense<0.000000e+00> : vector<128x256xf32>
    %31 = tpu.matmul %30, %29, %cst_11 {dimension_numbers = #tpu.dot_dimension_numbers<[1], [0], [0], [1], [0, 0, 1, 1], [], []>} : vector<128x128xf32>, vector<128x256xf32>, vector<128x256xf32> -> vector<128x256xf32>
    %c0_12 = arith.constant 0 : index
    %c0_13 = arith.constant 0 : index
    %32 = vector.load %arg7[%c0_12, %c0_13] : memref<128x1xf32, #tpu.memory_space<vmem>>, vector<128x1xf32>
    %33 = vector.broadcast %32 : vector<128x1xf32> to vector<128x256xf32>
    %34 = arith.addf %31, %33 : vector<128x256xf32>
    %cst_14 = arith.constant 0.000000e+00 : f32
    %35 = vector.broadcast %cst_14 : f32 to vector<128x256xf32>
    %36 = arith.maximumf %34, %35 : vector<128x256xf32>
    %c0_15 = arith.constant 0 : index
    %c0_16 = arith.constant 0 : index
    %37 = vector.load %arg8[%c0_15, %c0_16] : memref<128x1xf32, #tpu.memory_space<vmem>>, vector<128x1xf32>
    %38 = vector.broadcast %37 : vector<128x1xf32> to vector<128x256xf32>
    %39 = arith.mulf %36, %38 : vector<128x256xf32>
    %cst_17 = arith.constant dense<0.000000e+00> : vector<256xf32>
    %40 = vector.multi_reduction <add>, %39, %cst_17 [0] : vector<128x256xf32> to vector<256xf32>
    %41 = vector.shape_cast %40 : vector<256xf32> to vector<1x256xf32>
    %c0_18 = arith.constant 0 : index
    %42 = memref.load %arg9[%c0_18] : memref<1xf32, #tpu.memory_space<smem>>
    %43 = vector.broadcast %42 : f32 to vector<1x256xf32>
    %44 = arith.addf %41, %43 : vector<1x256xf32>
    %c0_19 = arith.constant 0 : index
    %c0_20 = arith.constant 0 : index
    %45 = vector.load %arg10[%c0_19, %c0_20] : memref<1x256xf32, #tpu.memory_space<vmem>>, vector<1x256xf32>
    tpu.vector_store %arg10[%c0_19, %c0_20], %44 {strides = array<i32>} : memref<1x256xf32, #tpu.memory_space<vmem>>, vector<1x256xf32>,
    return
  }
  func.func @transform_0(%arg0: i32) -> (i32, i32) {
    %c0_i32 = arith.constant 0 : i32
    %c0_i32_0 = arith.constant 0 : i32
    return %c0_i32, %arg0 : i32, i32
  }
  func.func @transform_1(%arg0: i32) -> (i32, i32) {
    %c0_i32 = arith.constant 0 : i32
    %c0_i32_0 = arith.constant 0 : i32
    return %c0_i32, %arg0 : i32, i32
  }
  func.func @transform_2(%arg0: i32) -> (i32, i32) {
    %c0_i32 = arith.constant 0 : i32
    %c0_i32_0 = arith.constant 0 : i32
    %c0_i32_1 = arith.constant 0 : i32
    return %c0_i32, %c0_i32_0 : i32, i32
  }
  func.func @transform_3(%arg0: i32) -> (i32, i32) {
    %c0_i32 = arith.constant 0 : i32
    %c0_i32_0 = arith.constant 0 : i32
    %c0_i32_1 = arith.constant 0 : i32
    return %c0_i32, %c0_i32_0 : i32, i32
  }
  func.func @transform_4(%arg0: i32) -> (i32, i32) {
    %c0_i32 = arith.constant 0 : i32
    %c0_i32_0 = arith.constant 0 : i32
    %c0_i32_1 = arith.constant 0 : i32
    return %c0_i32, %c0_i32_0 : i32, i32
  }
  func.func @transform_5(%arg0: i32) -> (i32, i32) {
    %c0_i32 = arith.constant 0 : i32
    %c0_i32_0 = arith.constant 0 : i32
    %c0_i32_1 = arith.constant 0 : i32
    return %c0_i32, %c0_i32_0 : i32, i32
  }
  func.func @transform_6(%arg0: i32) -> (i32, i32) {
    %c0_i32 = arith.constant 0 : i32
    %c0_i32_0 = arith.constant 0 : i32
    %c0_i32_1 = arith.constant 0 : i32
    return %c0_i32, %c0_i32_0 : i32, i32
  }
  func.func @transform_7(%arg0: i32) -> (i32, i32) {
    %c0_i32 = arith.constant 0 : i32
    %c0_i32_0 = arith.constant 0 : i32
    %c0_i32_1 = arith.constant 0 : i32
    return %c0_i32, %c0_i32_0 : i32, i32
  }
  func.func @transform_8(%arg0: i32) -> i32 {
    %c0_i32 = arith.constant 0 : i32
    %c0_i32_0 = arith.constant 0 : i32
    return %c0_i32 : i32
  }
  func.func @transform_9(%arg0: i32) -> (i32, i32) {
    %c0_i32 = arith.constant 0 : i32
    %c0_i32_0 = arith.constant 0 : i32
    return %c0_i32, %arg0 : i32, i32
  }
}

</mosaic_0001>

<llo_original>
// kernel: tpu_custom_call.1
$region0: #{tpu_custom_call.1}
  #allocation0 [shape = 'u32[]', space=smem, size = 0x4, offset = 0x4, fixed_abs, tag = 'smem constant byte address 0x4 - core index']
  #allocation1 [shape = 'u32[144,128]{1,0:T(1,128)}', space=vmem, size = 0x12000, scoped, tag = 'internal scratch']
  #allocation2 [shape = 'f32[1]{0:T(128)S(6)}', space=smem, size = 0x200, scoped, tag = 'scoped memory for tpu_custom_call.1']
  %s0 = inlined_call_operand.vmem [shape: f32[3,384], index: 0, kind: input, shape index: {}]
  %s1 = inlined_call_operand.vmem [shape: f32[1,384], index: 1, kind: input, shape index: {}]
  %s2 = inlined_call_operand.vmem [shape: f32[128,3], index: 2, kind: input, shape index: {}]
  %s3 = inlined_call_operand.vmem [shape: f32[128,1], index: 3, kind: input, shape index: {}]
  %s4 = inlined_call_operand.vmem [shape: f32[128,1], index: 4, kind: input, shape index: {}]
  %s5 = inlined_call_operand.vmem [shape: f32[128,128], index: 5, kind: input, shape index: {}]
  %s6 = inlined_call_operand.vmem [shape: f32[128,1], index: 6, kind: input, shape index: {}]
  %s7 = inlined_call_operand.vmem [shape: f32[128,1], index: 7, kind: input, shape index: {}]
  %s8 = inlined_call_operand.<no memory space> [shape: f32[1], index: 8, kind: input, shape index: {}]
  %s9 = inlined_call_operand.hbm [shape: f32[1,384], index: 9, kind: output, shape index: {}]
  %s10 = sld [smem:[#allocation0]]
  $region69: #{tpu_custom_call.1} parent=0
    _
  %s12 = ssub.s32 1, %s10
  %s13 = scalar_select 0, %s12, %s10
  %14 = sst [smem:[#allocation2]] %s8
  $region1: #{tpu_custom_call.1} parent=0
    #allocation3 [shape = 'u8[2048]{0}', space=vmem, size = 0x800, scoped, tag = 'output window, operand 0']
    #allocation4 [shape = 's32[2]{0}', space=sflag, size = 0x8, scoped, tag = 'scoped memory for tpu_custom_call.1']
    %15 = vsyncpa [#allocation4], 0
    %s16 = scalar_lea.sflag [#allocation4], 1
    %17 = vsyncpa %s16, 0
    loop: start=0, step=1, limit=4
    $region2: #{tpu_custom_call.1} parent=1 // loop_pre_header
      _
    $region3: #{tpu_custom_call.1} parent=1 // loop_header
      %s19 = sphi 0, %s23
      %p20 = scmp.ge.s32.totalorder %s19, 4
      %s29 = sphi 0, %s31
      %s32 = sphi 0, %s29
      %s33 = sphi 0, %s32
      %s49 = sphi 0, %s33
      %s55 = sphi 0, %s57
      %s58 = sphi 0, %s55
      %s59 = sphi 0, %s58
      %s75 = sphi 0, %s59
      %s79 = sphi 0, %s79
      %s81 = sphi 0, %s79
      %s82 = sphi 0, %s81
      %s96 = sphi 0, %s82
      %s100 = sphi 0, %s100
      %s102 = sphi 0, %s100
      %s103 = sphi 0, %s102
      %s117 = sphi 0, %s103
      %s121 = sphi 0, %s121
      %s123 = sphi 0, %s121
      %s124 = sphi 0, %s123
      %s138 = sphi 0, %s124
      %s142 = sphi 0, %s142
      %s144 = sphi 0, %s142
      %s145 = sphi 0, %s144
      %s159 = sphi 0, %s145
      %s163 = sphi 0, %s163
      %s165 = sphi 0, %s163
      %s166 = sphi 0, %s165
      %s180 = sphi 0, %s166
      %s184 = sphi 0, %s184
      %s186 = sphi 0, %s184
      %s187 = sphi 0, %s186
      %s201 = sphi 0, %s187
      %s205 = sphi 0, %s205
      %s207 = sphi 0, %s205
      %s208 = sphi 0, %s207
      %s222 = sphi 0, %s208
      %s228 = sphi 0, %s230
      %s231 = sphi 0, %s228
      %s232 = sphi 0, %s231
      %s248 = sphi 0, %s232
    $region4: #{tpu_custom_call.1} parent=1 // loop_header_branch
      %22 = sbr.rel (%p20) target = $region8
    $region5: #{tpu_custom_call.1} parent=1 // loop_body
      %s24 = ssub.s32 %s19, 1
      %s25 = ssub.s32 %s19, 2
      %s26 = sadd.s32 %s19, 1
      %s27 = ssub.s32 %s19, %s26
      %p28 = scmp.eq.s32.totalorder %s27, 0
      %s30 = sadd.s32 %s29, 1
      %s31 = scalar_select %p28, %s29, %s30
      %p34 = pneg %p28
      %p35 = scmp.eq.s32.totalorder %s19, 1
      %p36 = por %p34, %p35
      %p37 = scmp.ne.s32.totalorder %s29, %s32
      %p38 = scmp.eq.s32.totalorder %s19, 0
      %p39 = por %p37, %p38
      %p40 = scmp.ne.s32.totalorder %s29, %s32
      %p41 = scmp.eq.s32.totalorder %s24, 1
      %p42 = por %p40, %p41
      %p43 = scmp.ne.s32.totalorder %s32, %s33
      %p44 = scmp.eq.s32.totalorder %s24, 0
      %p45 = por %p43, %p44
      %p46 = scmp.ne.s32.totalorder %s32, %s33
      %p47 = scmp.eq.s32.totalorder %s25, 1
      %p48 = por %p46, %p47
      %p50 = scmp.ne.s32.totalorder %s33, %s49
      %p51 = scmp.eq.s32.totalorder %s25, 0
      %p52 = por %p50, %p51
      %s53 = ssub.s32 %s19, %s26
      %p54 = scmp.eq.s32.totalorder %s53, 0
      %s56 = sadd.s32 %s55, 1
      %s57 = scalar_select %p54, %s55, %s56
      %p60 = pneg %p54
      %p61 = scmp.eq.s32.totalorder %s19, 1
      %p62 = por %p60, %p61
      %p63 = scmp.ne.s32.totalorder %s55, %s58
      %p64 = scmp.eq.s32.totalorder %s19, 0
      %p65 = por %p63, %p64
      %p66 = scmp.ne.s32.totalorder %s55, %s58
      %p67 = scmp.eq.s32.totalorder %s24, 1
      %p68 = por %p66, %p67
      %p69 = scmp.ne.s32.totalorder %s58, %s59
      %p70 = scmp.eq.s32.totalorder %s24, 0
      %p71 = por %p69, %p70
      %p72 = scmp.ne.s32.totalorder %s58, %s59
      %p73 = scmp.eq.s32.totalorder %s25, 1
      %p74 = por %p72, %p73
      %p76 = scmp.ne.s32.totalorder %s59, %s75
      %p77 = scmp.eq.s32.totalorder %s25, 0
      %p78 = por %p76, %p77
      %s80 = sadd.s32 %s79, 1
      %p83 = scmp.eq.s32.totalorder %s19, 1
      %p84 = scmp.ne.s32.totalorder %s79, %s81
      %p85 = scmp.eq.s32.totalorder %s19, 0
      %p86 = por %p84, %p85
      %p87 = scmp.ne.s32.totalorder %s79, %s81
      %p88 = scmp.eq.s32.totalorder %s24, 1
      %p89 = por %p87, %p88
      %p90 = scmp.ne.s32.totalorder %s81, %s82
      %p91 = scmp.eq.s32.totalorder %s24, 0
      %p92 = por %p90, %p91
      %p93 = scmp.ne.s32.totalorder %s81, %s82
      %p94 = scmp.eq.s32.totalorder %s25, 1
      %p95 = por %p93, %p94
      %p97 = scmp.ne.s32.totalorder %s82, %s96
      %p98 = scmp.eq.s32.totalorder %s25, 0
      %p99 = por %p97, %p98
      %s101 = sadd.s32 %s100, 1
      %p104 = scmp.eq.s32.totalorder %s19, 1
      %p105 = scmp.ne.s32.totalorder %s100, %s102
      %p106 = scmp.eq.s32.totalorder %s19, 0
      %p107 = por %p105, %p106
      %p108 = scmp.ne.s32.totalorder %s100, %s102
      %p109 = scmp.eq.s32.totalorder %s24, 1
      %p110 = por %p108, %p109
      %p111 = scmp.ne.s32.totalorder %s102, %s103
      %p112 = scmp.eq.s32.totalorder %s24, 0
      %p113 = por %p111, %p112
      %p114 = scmp.ne.s32.totalorder %s102, %s103
      %p115 = scmp.eq.s32.totalorder %s25, 1
      %p116 = por %p114, %p115
      %p118 = scmp.ne.s32.totalorder %s103, %s117
      %p119 = scmp.eq.s32.totalorder %s25, 0
      %p120 = por %p118, %p119
      %s122 = sadd.s32 %s121, 1
      %p125 = scmp.eq.s32.totalorder %s19, 1
      %p126 = scmp.ne.s32.totalorder %s121, %s123
      %p127 = scmp.eq.s32.totalorder %s19, 0
      %p128 = por %p126, %p127
      %p129 = scmp.ne.s32.totalorder %s121, %s123
      %p130 = scmp.eq.s32.totalorder %s24, 1
      %p131 = por %p129, %p130
      %p132 = scmp.ne.s32.totalorder %s123, %s124
      %p133 = scmp.eq.s32.totalorder %s24, 0
      %p134 = por %p132, %p133
      %p135 = scmp.ne.s32.totalorder %s123, %s124
      %p136 = scmp.eq.s32.totalorder %s25, 1
      %p137 = por %p135, %p136
      %p139 = scmp.ne.s32.totalorder %s124, %s138
      %p140 = scmp.eq.s32.totalorder %s25, 0
      %p141 = por %p139, %p140
      %s143 = sadd.s32 %s142, 1
      %p146 = scmp.eq.s32.totalorder %s19, 1
      %p147 = scmp.ne.s32.totalorder %s142, %s144
      %p148 = scmp.eq.s32.totalorder %s19, 0
      %p149 = por %p147, %p148
      %p150 = scmp.ne.s32.totalorder %s142, %s144
      %p151 = scmp.eq.s32.totalorder %s24, 1
      %p152 = por %p150, %p151
      %p153 = scmp.ne.s32.totalorder %s144, %s145
      %p154 = scmp.eq.s32.totalorder %s24, 0
      %p155 = por %p153, %p154
      %p156 = scmp.ne.s32.totalorder %s144, %s145
      %p157 = scmp.eq.s32.totalorder %s25, 1
      %p158 = por %p156, %p157
      %p160 = scmp.ne.s32.totalorder %s145, %s159
      %p161 = scmp.eq.s32.totalorder %s25, 0
      %p162 = por %p160, %p161
      %s164 = sadd.s32 %s163, 1
      %p167 = scmp.eq.s32.totalorder %s19, 1
      %p168 = scmp.ne.s32.totalorder %s163, %s165
      %p169 = scmp.eq.s32.totalorder %s19, 0
      %p170 = por %p168, %p169
      %p171 = scmp.ne.s32.totalorder %s163, %s165
      %p172 = scmp.eq.s32.totalorder %s24, 1
      %p173 = por %p171, %p172
      %p174 = scmp.ne.s32.totalorder %s165, %s166
      %p175 = scmp.eq.s32.totalorder %s24, 0
      %p176 = por %p174, %p175
      %p177 = scmp.ne.s32.totalorder %s165, %s166
      %p178 = scmp.eq.s32.totalorder %s25, 1
      %p179 = por %p177, %p178
      %p181 = scmp.ne.s32.totalorder %s166, %s180
      %p182 = scmp.eq.s32.totalorder %s25, 0
      %p183 = por %p181, %p182
      %s185 = sadd.s32 %s184, 1
      %p188 = scmp.eq.s32.totalorder %s19, 1
      %p189 = scmp.ne.s32.totalorder %s184, %s186
      %p190 = scmp.eq.s32.totalorder %s19, 0
      %p191 = por %p189, %p190
      %p192 = scmp.ne.s32.totalorder %s184, %s186
      %p193 = scmp.eq.s32.totalorder %s24, 1
      %p194 = por %p192, %p193
      %p195 = scmp.ne.s32.totalorder %s186, %s187
      %p196 = scmp.eq.s32.totalorder %s24, 0
      %p197 = por %p195, %p196
      %p198 = scmp.ne.s32.totalorder %s186, %s187
      %p199 = scmp.eq.s32.totalorder %s25, 1
      %p200 = por %p198, %p199
      %p202 = scmp.ne.s32.totalorder %s187, %s201
      %p203 = scmp.eq.s32.totalorder %s25, 0
      %p204 = por %p202, %p203
      %s206 = sadd.s32 %s205, 1
      %p209 = scmp.eq.s32.totalorder %s19, 1
      %p210 = scmp.ne.s32.totalorder %s205, %s207
      %p211 = scmp.eq.s32.totalorder %s19, 0
      %p212 = por %p210, %p211
      %p213 = scmp.ne.s32.totalorder %s205, %s207
      %p214 = scmp.eq.s32.totalorder %s24, 1
      %p215 = por %p213, %p214
      %p216 = scmp.ne.s32.totalorder %s207, %s208
      %p217 = scmp.eq.s32.totalorder %s24, 0
      %p218 = por %p216, %p217
      %p219 = scmp.ne.s32.totalorder %s207, %s208
      %p220 = scmp.eq.s32.totalorder %s25, 1
      %p221 = por %p219, %p220
      %p223 = scmp.ne.s32.totalorder %s208, %s222
      %p224 = scmp.eq.s32.totalorder %s25, 0
      %p225 = por %p223, %p224
      %s226 = ssub.s32 %s19, %s26
      %p227 = scmp.eq.s32.totalorder %s226, 0
      %s229 = sadd.s32 %s228, 1
      %s230 = scalar_select %p227, %s228, %s229
      %p233 = pneg %p227
      %p234 = scmp.eq.s32.totalorder %s19, 1
      %p235 = por %p233, %p234
      %p236 = scmp.ne.s32.totalorder %s228, %s231
      %p237 = scmp.eq.s32.totalorder %s19, 0
      %p238 = por %p236, %p237
      %p239 = scmp.ne.s32.totalorder %s228, %s231
      %p240 = scmp.eq.s32.totalorder %s24, 1
      %p241 = por %p239, %p240
      %p242 = scmp.ne.s32.totalorder %s231, %s232
      %p243 = scmp.eq.s32.totalorder %s24, 0
      %p244 = por %p242, %p243
      %p245 = scmp.ne.s32.totalorder %s231, %s232
      %p246 = scmp.eq.s32.totalorder %s25, 1
      %p247 = por %p245, %p246
      %p249 = scmp.ne.s32.totalorder %s232, %s248
      %p250 = scmp.eq.s32.totalorder %s25, 0
      %p251 = por %p249, %p250
      %p252 = scmp.le.s32.totalorder 1, %s19
      %p253 = scmp.lt.s32.totalorder %s19, 3
      %p254 = pnand %p252, %p253
      %p255 = pneg %p254
      // Predicated region
      $region9: #{tpu_custom_call.1} parent=5 // pred_check
        _
      $region10: #{tpu_custom_call.1} parent=5 // pred_check_branch
        %257 = sbr.rel (%p254) target = $region12
      $region11: #{tpu_custom_call.1} parent=5 // pred_region
        %s258 = ssub.s32 %s19, 1
        // Predicated region
        $region13: #{tpu_custom_call.1} parent=11 // pred_check
          %p259 = pneg %p92
        $region14: #{tpu_custom_call.1} parent=11 // pred_check_branch
          %261 = sbr.rel (%p259) target = $region16
        $region15: #{tpu_custom_call.1} parent=11 // pred_region
          _
        $region16: #{tpu_custom_call.1} parent=11 // pred_fallthru
          _
        // Predicated region
        $region17: #{tpu_custom_call.1} parent=11 // pred_check
          %p262 = pneg %p113
        $region18: #{tpu_custom_call.1} parent=11 // pred_check_branch
          %264 = sbr.rel (%p262) target = $region20
        $region19: #{tpu_custom_call.1} parent=11 // pred_region
          _
        $region20: #{tpu_custom_call.1} parent=11 // pred_fallthru
          _
        // Predicated region
        $region21: #{tpu_custom_call.1} parent=11 // pred_check
          %p265 = pneg %p134
        $region22: #{tpu_custom_call.1} parent=11 // pred_check_branch
          %267 = sbr.rel (%p265) target = $region24
        $region23: #{tpu_custom_call.1} parent=11 // pred_region
          _
        $region24: #{tpu_custom_call.1} parent=11 // pred_fallthru
          _
        // Predicated region
        $region25: #{tpu_custom_call.1} parent=11 // pred_check
          %p268 = pneg %p155
        $region26: #{tpu_custom_call.1} parent=11 // pred_check_branch
          %270 = sbr.rel (%p268) target = $region28
        $region27: #{tpu_custom_call.1} parent=11 // pred_region
          _
        $region28: #{tpu_custom_call.1} parent=11 // pred_fallthru
          _
        // Predicated region
        $region29: #{tpu_custom_call.1} parent=11 // pred_check
          %p271 = pneg %p176
        $region30: #{tpu_custom_call.1} parent=11 // pred_check_branch
          %273 = sbr.rel (%p271) target = $region32
        $region31: #{tpu_custom_call.1} parent=11 // pred_region
          _
        $region32: #{tpu_custom_call.1} parent=11 // pred_fallthru
          _
        // Predicated region
        $region33: #{tpu_custom_call.1} parent=11 // pred_check
          %p274 = pneg %p197
        $region34: #{tpu_custom_call.1} parent=11 // pred_check_branch
          %276 = sbr.rel (%p274) target = $region36
        $region35: #{tpu_custom_call.1} parent=11 // pred_region
          _
        $region36: #{tpu_custom_call.1} parent=11 // pred_fallthru
          _
        // Predicated region
        $region37: #{tpu_custom_call.1} parent=11 // pred_check
          %p277 = pneg %p218
        $region38: #{tpu_custom_call.1} parent=11 // pred_check_branch
          %279 = sbr.rel (%p277) target = $region40
        $region39: #{tpu_custom_call.1} parent=11 // pred_region
          _
        $region40: #{tpu_custom_call.1} parent=11 // pred_fallthru
          _
      $region12: #{tpu_custom_call.1} parent=5 // pred_fallthru
        _
      %p280 = scmp.lt.s32.totalorder %s19, 2
      // Predicated region
      $region41: #{tpu_custom_call.1} parent=5 // pred_check
        %p281 = pneg %p280
      $region42: #{tpu_custom_call.1} parent=5 // pred_check_branch
        %283 = sbr.rel (%p281) target = $region44
      $region43: #{tpu_custom_call.1} parent=5 // pred_region
        // Predicated region
        $region45: #{tpu_custom_call.1} parent=43 // pred_check
          %p284 = pneg %p39
        $region46: #{tpu_custom_call.1} parent=43 // pred_check_branch
          %286 = sbr.rel (%p284) target = $region48
        $region47: #{tpu_custom_call.1} parent=43 // pred_region
          %s287 = smul.u32 2, %s19
          %s288 = ssub.s32 3, %s287
          %p289 = scmp.lt.s32.totalorder %s288, 2
          %s290 = scalar_select %p289, %s288, 2
          %s291 = smul.u32 64, %s290
          %p292 = scmp.lt.s32.totalorder %s287, 2
          %s293 = scalar_select %p292, %s287, 2
          %s294 = smul.addr %s293, 4
          %s295 = scalar_lea.vmem %s0, %s294
          %s296 = smul.u32 2, %s19
          %s297 = ssub.s32 3, %s296
          %p298 = scmp.lt.s32.totalorder %s297, 2
          %s299 = scalar_select %p298, %s297, 2
          %s300 = smul.u32 64, %s299
        $region48: #{tpu_custom_call.1} parent=43 // pred_fallthru
          _
        // Predicated region
        $region49: #{tpu_custom_call.1} parent=43 // pred_check
          %p301 = pneg %p65
        $region50: #{tpu_custom_call.1} parent=43 // pred_check_branch
          %303 = sbr.rel (%p301) target = $region52
        $region51: #{tpu_custom_call.1} parent=43 // pred_region
          %s304 = smul.u32 2, %s19
          %s305 = ssub.s32 3, %s304
          %p306 = scmp.lt.s32.totalorder %s305, 2
          %s307 = scalar_select %p306, %s305, 2
          %s308 = smul.u32 16, %s307
          %p309 = scmp.lt.s32.totalorder %s304, 2
          %s310 = scalar_select %p309, %s304, 2
          %s311 = scalar_lea.vmem %s1, %s310
          %s312 = smul.u32 2, %s19
          %s313 = ssub.s32 3, %s312
          %p314 = scmp.lt.s32.totalorder %s313, 2
          %s315 = scalar_select %p314, %s313, 2
          %s316 = smul.u32 16, %s315
        $region52: #{tpu_custom_call.1} parent=43 // pred_fallthru
          _
      $region44: #{tpu_custom_call.1} parent=5 // pred_fallthru
        _
      %p317 = scmp.le.s32.totalorder 1, %s19
      %p318 = scmp.lt.s32.totalorder %s19, 3
      %p319 = pnand %p317, %p318
      %p320 = pneg %p319
      // Predicated region
      $region53: #{tpu_custom_call.1} parent=5 // pred_check
        _
      $region54: #{tpu_custom_call.1} parent=5 // pred_check_branch
        %322 = sbr.rel (%p319) target = $region56
      $region55: #{tpu_custom_call.1} parent=5 // pred_region
        %s323 = ssub.s32 %s19, 1
        %s324 = smul.u32 2, %s24
        %s325 = ssub.s32 3, %s324
        %p326 = scmp.lt.s32.totalorder %s325, 2
        %s327 = scalar_select %p326, %s325, 2
        %s328 = smul.u32 64, %s327
        %p329 = scmp.lt.s32.totalorder %s324, 2
        %s330 = scalar_select %p329, %s324, 2
        %s331 = smul.addr %s330, 4
        %s332 = scalar_lea.vmem %s0, %s331
        %p333 = pneg %p45
        %p334 = pneg %p42
        %s335 = smul.u32 2, %s24
        %s336 = ssub.s32 3, %s335
        %p337 = scmp.lt.s32.totalorder %s336, 2
        %s338 = scalar_select %p337, %s336, 2
        %s339 = smul.u32 16, %s338
        %p340 = scmp.lt.s32.totalorder %s335, 2
        %s341 = scalar_select %p340, %s335, 2
        %s342 = scalar_lea.vmem %s1, %s341
        %p343 = pneg %p71
        %p344 = pneg %p68
        %p345 = pneg %p92
        %p346 = pneg %p89
        %p347 = pneg %p113
        %p348 = pneg %p110
        %p349 = pneg %p134
        %p350 = pneg %p131
        %p351 = pneg %p155
        %p352 = pneg %p152
        %p353 = pneg %p176
        %p354 = pneg %p173
        %p355 = pneg %p197
        %p356 = pneg %p194
        %p357 = pneg %p218
        %p358 = pneg %p215
        %p359 = pneg %p244
        %p360 = pneg %p241
        %s361 = sand.u32 %s231, 1
        %s362 = scalar_lea.sflag [#allocation4], %s361
        %s363 = sand.u32 %s231, 1
        %s364 = smul.addr %s363, 2
        %s365 = scalar_lea.vmem [#allocation3], %s364
        %s366 = smul.u32 2, %s24
        %s367 = ssub.s32 3, %s366
        %p368 = scmp.lt.s32.totalorder %s367, 2
        %s369 = scalar_select %p368, %s367, 2
        %s370 = smul.u32 64, %s369
        %p371 = scmp.lt.s32.totalorder %s366, 2
        %s372 = scalar_select %p371, %s366, 2
        %s373 = smul.addr %s372, 4
        %s374 = scalar_lea.vmem %s0, %s373
        %s375 = smul.u32 2, %s24
        %s376 = ssub.s32 3, %s375
        %p377 = scmp.lt.s32.totalorder %s376, 2
        %s378 = scalar_select %p377, %s376, 2
        %s379 = smul.u32 64, %s378
        %s380 = smul.u32 2, %s24
        %s381 = ssub.s32 3, %s380
        %p382 = scmp.lt.s32.totalorder %s381, 2
        %s383 = scalar_select %p382, %s381, 2
        %s384 = smul.u32 16, %s383
        %p385 = scmp.lt.s32.totalorder %s380, 2
        %s386 = scalar_select %p385, %s380, 2
        %s387 = scalar_lea.vmem %s1, %s386
        %s388 = smul.u32 2, %s24
        %s389 = ssub.s32 3, %s388
        %p390 = scmp.lt.s32.totalorder %s389, 2
        %s391 = scalar_select %p390, %s389, 2
        %s392 = smul.u32 16, %s391
        %s393 = smul.u32 2, %s24
        %s394 = ssub.s32 3, %s393
        %p395 = scmp.lt.s32.totalorder %s394, 2
        %s396 = scalar_select %p395, %s394, 2
        %s397 = smul.u32 16, %s396
        %v398 = vld [vmem:[%s374] sm:$0x77]
        %v399 = vld [vmem:[%s387] sm:$0x3]
        %v400 = vld [vmem:[%s2] sm:$0xff]
        %v401 = vld [vmem:[%s2 + $0x8] sm:$0xff]
        %v402 = vld [vmem:[%s2 + $0x10] sm:$0xff]
        %v403 = vld [vmem:[%s2 + $0x18] sm:$0xff]
        %v404 = vld [vmem:[%s2 + $0x20] sm:$0xff]
        %v405 = vld [vmem:[%s2 + $0x28] sm:$0xff]
        %v406 = vld [vmem:[%s2 + $0x30] sm:$0xff]
        %v407 = vld [vmem:[%s2 + $0x38] sm:$0xff]
        %v408 = vld [vmem:[%s2 + $0x40] sm:$0xff]
        %v409 = vld [vmem:[%s2 + $0x48] sm:$0xff]
        %v410 = vld [vmem:[%s2 + $0x50] sm:$0xff]
        %v411 = vld [vmem:[%s2 + $0x58] sm:$0xff]
        %v412 = vld [vmem:[%s2 + $0x60] sm:$0xff]
        %v413 = vld [vmem:[%s2 + $0x68] sm:$0xff]
        %v414 = vld [vmem:[%s2 + $0x70] sm:$0xff]
        %v415 = vld [vmem:[%s2 + $0x78] sm:$0xff]
        %v416 = vld [vmem:[%s3] sm:$0xff]
        %v417 = vld [vmem:[%s3 + $0x8] sm:$0xff]
        %v418 = vld [vmem:[%s3 + $0x10] sm:$0xff]
        %v419 = vld [vmem:[%s3 + $0x18] sm:$0xff]
        %v420 = vld [vmem:[%s3 + $0x20] sm:$0xff]
        %v421 = vld [vmem:[%s3 + $0x28] sm:$0xff]
        %v422 = vld [vmem:[%s3 + $0x30] sm:$0xff]
        %v423 = vld [vmem:[%s3 + $0x38] sm:$0xff]
        %v424 = vld [vmem:[%s3 + $0x40] sm:$0xff]
        %v425 = vld [vmem:[%s3 + $0x48] sm:$0xff]
        %v426 = vld [vmem:[%s3 + $0x50] sm:$0xff]
        %v427 = vld [vmem:[%s3 + $0x58] sm:$0xff]
        %v428 = vld [vmem:[%s3 + $0x60] sm:$0xff]
        %v429 = vld [vmem:[%s3 + $0x68] sm:$0xff]
        %v430 = vld [vmem:[%s3 + $0x70] sm:$0xff]
        %v431 = vld [vmem:[%s3 + $0x78] sm:$0xff]
        %v432 = vld [vmem:[%s4] sm:$0xff]
        %v433 = vld [vmem:[%s4 + $0x8] sm:$0xff]
        %v434 = vld [vmem:[%s4 + $0x10] sm:$0xff]
        %v435 = vld [vmem:[%s4 + $0x18] sm:$0xff]
        %v436 = vld [vmem:[%s4 + $0x20] sm:$0xff]
        %v437 = vld [vmem:[%s4 + $0x28] sm:$0xff]
        %v438 = vld [vmem:[%s4 + $0x30] sm:$0xff]
        %v439 = vld [vmem:[%s4 + $0x38] sm:$0xff]
        %v440 = vld [vmem:[%s4 + $0x40] sm:$0xff]
        %v441 = vld [vmem:[%s4 + $0x48] sm:$0xff]
        %v442 = vld [vmem:[%s4 + $0x50] sm:$0xff]
        %v443 = vld [vmem:[%s4 + $0x58] sm:$0xff]
        %v444 = vld [vmem:[%s4 + $0x60] sm:$0xff]
        %v445 = vld [vmem:[%s4 + $0x68] sm:$0xff]
        %v446 = vld [vmem:[%s4 + $0x70] sm:$0xff]
        %v447 = vld [vmem:[%s4 + $0x78] sm:$0xff]
        %449 = vset.pattern.permute.xlu0 0
        %450 = vperm.xlu0 %449, %v400
        %v451 = vpop.permute.xlu0 %450
        %454 = vset.pattern.permute.xlu0 0
        %455 = vperm.xlu0 %454, %v401
        %v456 = vpop.permute.xlu0 %455
        %459 = vset.pattern.permute.xlu0 0
        %460 = vperm.xlu0 %459, %v402
        %v461 = vpop.permute.xlu0 %460
        %464 = vset.pattern.permute.xlu0 0
        %465 = vperm.xlu0 %464, %v403
        %v466 = vpop.permute.xlu0 %465
        %469 = vset.pattern.permute.xlu0 0
        %470 = vperm.xlu0 %469, %v404
        %v471 = vpop.permute.xlu0 %470
        %474 = vset.pattern.permute.xlu0 0
        %475 = vperm.xlu0 %474, %v405
        %v476 = vpop.permute.xlu0 %475
        %479 = vset.pattern.permute.xlu0 0
        %480 = vperm.xlu0 %479, %v406
        %v481 = vpop.permute.xlu0 %480
        %484 = vset.pattern.permute.xlu0 0
        %485 = vperm.xlu0 %484, %v407
        %v486 = vpop.permute.xlu0 %485
        %489 = vset.pattern.permute.xlu0 0
        %490 = vperm.xlu0 %489, %v408
        %v491 = vpop.permute.xlu0 %490
        %494 = vset.pattern.permute.xlu0 0
        %495 = vperm.xlu0 %494, %v409
        %v496 = vpop.permute.xlu0 %495
        %499 = vset.pattern.permute.xlu0 0
        %500 = vperm.xlu0 %499, %v410
        %v501 = vpop.permute.xlu0 %500
        %504 = vset.pattern.permute.xlu0 0
        %505 = vperm.xlu0 %504, %v411
        %v506 = vpop.permute.xlu0 %505
        %509 = vset.pattern.permute.xlu0 0
        %510 = vperm.xlu0 %509, %v412
        %v511 = vpop.permute.xlu0 %510
        %514 = vset.pattern.permute.xlu0 0
        %515 = vperm.xlu0 %514, %v413
        %v516 = vpop.permute.xlu0 %515
        %519 = vset.pattern.permute.xlu0 0
        %520 = vperm.xlu0 %519, %v414
        %v521 = vpop.permute.xlu0 %520
        %524 = vset.pattern.permute.xlu0 0
        %525 = vperm.xlu0 %524, %v415
        %v526 = vpop.permute.xlu0 %525
        %v529 = vlaneseq
        %v530 = vshrl.u32 %v529, 7
        %v531 = vsub.s32 0, %v530
        %v532 = vrot.slane %v398, %v531
        %v533 = vlaneseq
        %v534 = vshrl.u32 %v533, 7
        %v535 = vsub.s32 4, %v534
        %v536 = vrot.slane %v398, %v535
        %v539 = vlaneseq
        %v540 = vshrl.u32 %v539, 7
        %v541 = vsub.s32 0, %v540
        %v542 = vrot.slane %v532, %v541
        %v543 = vlaneseq
        %v544 = vshrl.u32 %v543, 7
        %v545 = vsub.s32 0, %v544
        %v546 = vrot.slane %v536, %v545
        %v547 = vmul.f32 %v451, %v542
        %v548 = vmul.f32 %v451, %v546
        %v549 = vmul.f32 %v456, %v542
        %v550 = vmul.f32 %v456, %v546
        %v551 = vmul.f32 %v461, %v542
        %v552 = vmul.f32 %v461, %v546
        %v553 = vmul.f32 %v466, %v542
        %v554 = vmul.f32 %v466, %v546
        %v555 = vmul.f32 %v471, %v542
        %v556 = vmul.f32 %v471, %v546
        %v557 = vmul.f32 %v476, %v542
        %v558 = vmul.f32 %v476, %v546
        %v559 = vmul.f32 %v481, %v542
        %v560 = vmul.f32 %v481, %v546
        %v561 = vmul.f32 %v486, %v542
        %v562 = vmul.f32 %v486, %v546
        %v563 = vmul.f32 %v491, %v542
        %v564 = vmul.f32 %v491, %v546
        %v565 = vmul.f32 %v496, %v542
        %v566 = vmul.f32 %v496, %v546
        %v567 = vmul.f32 %v501, %v542
        %v568 = vmul.f32 %v501, %v546
        %v569 = vmul.f32 %v506, %v542
        %v570 = vmul.f32 %v506, %v546
        %v571 = vmul.f32 %v511, %v542
        %v572 = vmul.f32 %v511, %v546
        %v573 = vmul.f32 %v516, %v542
        %v574 = vmul.f32 %v516, %v546
        %v575 = vmul.f32 %v521, %v542
        %v576 = vmul.f32 %v521, %v546
        %v577 = vmul.f32 %v526, %v542
        %v578 = vmul.f32 %v526, %v546
        %580 = vset.pattern.permute.xlu0 0
        %581 = vperm.xlu0 %580, %v432
        %v582 = vpop.permute.xlu0 %581
        %585 = vset.pattern.permute.xlu0 0
        %586 = vperm.xlu0 %585, %v433
        %v587 = vpop.permute.xlu0 %586
        %590 = vset.pattern.permute.xlu0 0
        %591 = vperm.xlu0 %590, %v434
        %v592 = vpop.permute.xlu0 %591
        %595 = vset.pattern.permute.xlu0 0
        %596 = vperm.xlu0 %595, %v435
        %v597 = vpop.permute.xlu0 %596
        %600 = vset.pattern.permute.xlu0 0
        %601 = vperm.xlu0 %600, %v436
        %v602 = vpop.permute.xlu0 %601
        %605 = vset.pattern.permute.xlu0 0
        %606 = vperm.xlu0 %605, %v437
        %v607 = vpop.permute.xlu0 %606
        %610 = vset.pattern.permute.xlu0 0
        %611 = vperm.xlu0 %610, %v438
        %v612 = vpop.permute.xlu0 %611
        %615 = vset.pattern.permute.xlu0 0
        %616 = vperm.xlu0 %615, %v439
        %v617 = vpop.permute.xlu0 %616
        %620 = vset.pattern.permute.xlu0 0
        %621 = vperm.xlu0 %620, %v440
        %v622 = vpop.permute.xlu0 %621
        %625 = vset.pattern.permute.xlu0 0
        %626 = vperm.xlu0 %625, %v441
        %v627 = vpop.permute.xlu0 %626
        %630 = vset.pattern.permute.xlu0 0
        %631 = vperm.xlu0 %630, %v442
        %v632 = vpop.permute.xlu0 %631
        %635 = vset.pattern.permute.xlu0 0
        %636 = vperm.xlu0 %635, %v443
        %v637 = vpop.permute.xlu0 %636
        %640 = vset.pattern.permute.xlu0 0
        %641 = vperm.xlu0 %640, %v444
        %v642 = vpop.permute.xlu0 %641
        %645 = vset.pattern.permute.xlu0 0
        %646 = vperm.xlu0 %645, %v445
        %v647 = vpop.permute.xlu0 %646
        %650 = vset.pattern.permute.xlu0 0
        %651 = vperm.xlu0 %650, %v446
        %v652 = vpop.permute.xlu0 %651
        %655 = vset.pattern.permute.xlu0 0
        %656 = vperm.xlu0 %655, %v447
        %v657 = vpop.permute.xlu0 %656
        %v659 = vadd.f32 %v582, %v547
        %v660 = vadd.f32 %v582, %v548
        %v661 = vadd.f32 %v587, %v549
        %v662 = vadd.f32 %v587, %v550
        %v663 = vadd.f32 %v592, %v551
        %v664 = vadd.f32 %v592, %v552
        %v665 = vadd.f32 %v597, %v553
        %v666 = vadd.f32 %v597, %v554
        %v667 = vadd.f32 %v602, %v555
        %v668 = vadd.f32 %v602, %v556
        %v669 = vadd.f32 %v607, %v557
        %v670 = vadd.f32 %v607, %v558
        %v671 = vadd.f32 %v612, %v559
        %v672 = vadd.f32 %v612, %v560
        %v673 = vadd.f32 %v617, %v561
        %v674 = vadd.f32 %v617, %v562
        %v675 = vadd.f32 %v622, %v563
        %v676 = vadd.f32 %v622, %v564
        %v677 = vadd.f32 %v627, %v565
        %v678 = vadd.f32 %v627, %v566
        %v679 = vadd.f32 %v632, %v567
        %v680 = vadd.f32 %v632, %v568
        %v681 = vadd.f32 %v637, %v569
        %v682 = vadd.f32 %v637, %v570
        %v683 = vadd.f32 %v642, %v571
        %v684 = vadd.f32 %v642, %v572
        %v685 = vadd.f32 %v647, %v573
        %v686 = vadd.f32 %v647, %v574
        %v687 = vadd.f32 %v652, %v575
        %v688 = vadd.f32 %v652, %v576
        %v689 = vadd.f32 %v657, %v577
        %v690 = vadd.f32 %v657, %v578
        %691 = vset.pattern.permute.xlu0 1
        %692 = vperm.xlu0 %691, %v400
        %v693 = vpop.permute.xlu0 %692
        %695 = vset.pattern.permute.xlu0 1
        %696 = vperm.xlu0 %695, %v401
        %v697 = vpop.permute.xlu0 %696
        %699 = vset.pattern.permute.xlu0 1
        %700 = vperm.xlu0 %699, %v402
        %v701 = vpop.permute.xlu0 %700
        %703 = vset.pattern.permute.xlu0 1
        %704 = vperm.xlu0 %703, %v403
        %v705 = vpop.permute.xlu0 %704
        %707 = vset.pattern.permute.xlu0 1
        %708 = vperm.xlu0 %707, %v404
        %v709 = vpop.permute.xlu0 %708
        %711 = vset.pattern.permute.xlu0 1
        %712 = vperm.xlu0 %711, %v405
        %v713 = vpop.permute.xlu0 %712
        %715 = vset.pattern.permute.xlu0 1
        %716 = vperm.xlu0 %715, %v406
        %v717 = vpop.permute.xlu0 %716
        %719 = vset.pattern.permute.xlu0 1
        %720 = vperm.xlu0 %719, %v407
        %v721 = vpop.permute.xlu0 %720
        %723 = vset.pattern.permute.xlu0 1
        %724 = vperm.xlu0 %723, %v408
        %v725 = vpop.permute.xlu0 %724
        %727 = vset.pattern.permute.xlu0 1
        %728 = vperm.xlu0 %727, %v409
        %v729 = vpop.permute.xlu0 %728
        %731 = vset.pattern.permute.xlu0 1
        %732 = vperm.xlu0 %731, %v410
        %v733 = vpop.permute.xlu0 %732
        %735 = vset.pattern.permute.xlu0 1
        %736 = vperm.xlu0 %735, %v411
        %v737 = vpop.permute.xlu0 %736
        %739 = vset.pattern.permute.xlu0 1
        %740 = vperm.xlu0 %739, %v412
        %v741 = vpop.permute.xlu0 %740
        %743 = vset.pattern.permute.xlu0 1
        %744 = vperm.xlu0 %743, %v413
        %v745 = vpop.permute.xlu0 %744
        %747 = vset.pattern.permute.xlu0 1
        %748 = vperm.xlu0 %747, %v414
        %v749 = vpop.permute.xlu0 %748
        %751 = vset.pattern.permute.xlu0 1
        %752 = vperm.xlu0 %751, %v415
        %v753 = vpop.permute.xlu0 %752
        %v755 = vlaneseq
        %v756 = vshrl.u32 %v755, 7
        %v757 = vsub.s32 1, %v756
        %v758 = vrot.slane %v398, %v757
        %v759 = vlaneseq
        %v760 = vshrl.u32 %v759, 7
        %v761 = vsub.s32 5, %v760
        %v762 = vrot.slane %v398, %v761
        %v765 = vlaneseq
        %v766 = vshrl.u32 %v765, 7
        %v767 = vsub.s32 1, %v766
        %v768 = vrot.slane %v758, %v767
        %v769 = vlaneseq
        %v770 = vshrl.u32 %v769, 7
        %v771 = vsub.s32 1, %v770
        %v772 = vrot.slane %v762, %v771
        %v773 = vmul.f32 %v693, %v768
        %v774 = vmul.f32 %v693, %v772
        %v775 = vmul.f32 %v697, %v768
        %v776 = vmul.f32 %v697, %v772
        %v777 = vmul.f32 %v701, %v768
        %v778 = vmul.f32 %v701, %v772
        %v779 = vmul.f32 %v705, %v768
        %v780 = vmul.f32 %v705, %v772
        %v781 = vmul.f32 %v709, %v768
        %v782 = vmul.f32 %v709, %v772
        %v783 = vmul.f32 %v713, %v768
        %v784 = vmul.f32 %v713, %v772
        %v785 = vmul.f32 %v717, %v768
        %v786 = vmul.f32 %v717, %v772
        %v787 = vmul.f32 %v721, %v768
        %v788 = vmul.f32 %v721, %v772
        %v789 = vmul.f32 %v725, %v768
        %v790 = vmul.f32 %v725, %v772
        %v791 = vmul.f32 %v729, %v768
        %v792 = vmul.f32 %v729, %v772
        %v793 = vmul.f32 %v733, %v768
        %v794 = vmul.f32 %v733, %v772
        %v795 = vmul.f32 %v737, %v768
        %v796 = vmul.f32 %v737, %v772
        %v797 = vmul.f32 %v741, %v768
        %v798 = vmul.f32 %v741, %v772
        %v799 = vmul.f32 %v745, %v768
        %v800 = vmul.f32 %v745, %v772
        %v801 = vmul.f32 %v749, %v768
        %v802 = vmul.f32 %v749, %v772
        %v803 = vmul.f32 %v753, %v768
        %v804 = vmul.f32 %v753, %v772
        %v805 = vadd.f32 %v659, %v773
        %v806 = vadd.f32 %v660, %v774
        %v807 = vadd.f32 %v661, %v775
        %v808 = vadd.f32 %v662, %v776
        %v809 = vadd.f32 %v663, %v777
        %v810 = vadd.f32 %v664, %v778
        %v811 = vadd.f32 %v665, %v779
        %v812 = vadd.f32 %v666, %v780
        %v813 = vadd.f32 %v667, %v781
        %v814 = vadd.f32 %v668, %v782
        %v815 = vadd.f32 %v669, %v783
        %v816 = vadd.f32 %v670, %v784
        %v817 = vadd.f32 %v671, %v785
        %v818 = vadd.f32 %v672, %v786
        %v819 = vadd.f32 %v673, %v787
        %v820 = vadd.f32 %v674, %v788
        %v821 = vadd.f32 %v675, %v789
        %v822 = vadd.f32 %v676, %v790
        %v823 = vadd.f32 %v677, %v791
        %v824 = vadd.f32 %v678, %v792
        %v825 = vadd.f32 %v679, %v793
        %v826 = vadd.f32 %v680, %v794
        %v827 = vadd.f32 %v681, %v795
        %v828 = vadd.f32 %v682, %v796
        %v829 = vadd.f32 %v683, %v797
        %v830 = vadd.f32 %v684, %v798
        %v831 = vadd.f32 %v685, %v799
        %v832 = vadd.f32 %v686, %v800
        %v833 = vadd.f32 %v687, %v801
        %v834 = vadd.f32 %v688, %v802
        %v835 = vadd.f32 %v689, %v803
        %v836 = vadd.f32 %v690, %v804
        %837 = vset.pattern.permute.xlu0 2
        %838 = vperm.xlu0 %837, %v400
        %v839 = vpop.permute.xlu0 %838
        %841 = vset.pattern.permute.xlu0 2
        %842 = vperm.xlu0 %841, %v401
        %v843 = vpop.permute.xlu0 %842
        %845 = vset.pattern.permute.xlu0 2
        %846 = vperm.xlu0 %845, %v402
        %v847 = vpop.permute.xlu0 %846
        %849 = vset.pattern.permute.xlu0 2
        %850 = vperm.xlu0 %849, %v403
        %v851 = vpop.permute.xlu0 %850
        %853 = vset.pattern.permute.xlu0 2
        %854 = vperm.xlu0 %853, %v404
        %v855 = vpop.permute.xlu0 %854
        %857 = vset.pattern.permute.xlu0 2
        %858 = vperm.xlu0 %857, %v405
        %v859 = vpop.permute.xlu0 %858
        %861 = vset.pattern.permute.xlu0 2
        %862 = vperm.xlu0 %861, %v406
        %v863 = vpop.permute.xlu0 %862
        %865 = vset.pattern.permute.xlu0 2
        %866 = vperm.xlu0 %865, %v407
        %v867 = vpop.permute.xlu0 %866
        %869 = vset.pattern.permute.xlu0 2
        %870 = vperm.xlu0 %869, %v408
        %v871 = vpop.permute.xlu0 %870
        %873 = vset.pattern.permute.xlu0 2
        %874 = vperm.xlu0 %873, %v409
        %v875 = vpop.permute.xlu0 %874
        %877 = vset.pattern.permute.xlu0 2
        %878 = vperm.xlu0 %877, %v410
        %v879 = vpop.permute.xlu0 %878
        %881 = vset.pattern.permute.xlu0 2
        %882 = vperm.xlu0 %881, %v411
        %v883 = vpop.permute.xlu0 %882
        %885 = vset.pattern.permute.xlu0 2
        %886 = vperm.xlu0 %885, %v412
        %v887 = vpop.permute.xlu0 %886
        %889 = vset.pattern.permute.xlu0 2
        %890 = vperm.xlu0 %889, %v413
        %v891 = vpop.permute.xlu0 %890
        %893 = vset.pattern.permute.xlu0 2
        %894 = vperm.xlu0 %893, %v414
        %v895 = vpop.permute.xlu0 %894
        %897 = vset.pattern.permute.xlu0 2
        %898 = vperm.xlu0 %897, %v415
        %v899 = vpop.permute.xlu0 %898
        %v901 = vlaneseq
        %v902 = vshrl.u32 %v901, 7
        %v903 = vsub.s32 2, %v902
        %v904 = vrot.slane %v398, %v903
        %v905 = vlaneseq
        %v906 = vshrl.u32 %v905, 7
        %v907 = vsub.s32 6, %v906
        %v908 = vrot.slane %v398, %v907
        %v911 = vlaneseq
        %v912 = vshrl.u32 %v911, 7
        %v913 = vsub.s32 2, %v912
        %v914 = vrot.slane %v904, %v913
        %v915 = vlaneseq
        %v916 = vshrl.u32 %v915, 7
        %v917 = vsub.s32 2, %v916
        %v918 = vrot.slane %v908, %v917
        %v919 = vmul.f32 %v839, %v914
        %v920 = vmul.f32 %v839, %v918
        %v921 = vmul.f32 %v843, %v914
        %v922 = vmul.f32 %v843, %v918
        %v923 = vmul.f32 %v847, %v914
        %v924 = vmul.f32 %v847, %v918
        %v925 = vmul.f32 %v851, %v914
        %v926 = vmul.f32 %v851, %v918
        %v927 = vmul.f32 %v855, %v914
        %v928 = vmul.f32 %v855, %v918
        %v929 = vmul.f32 %v859, %v914
        %v930 = vmul.f32 %v859, %v918
        %v931 = vmul.f32 %v863, %v914
        %v932 = vmul.f32 %v863, %v918
        %v933 = vmul.f32 %v867, %v914
        %v934 = vmul.f32 %v867, %v918
        %v935 = vmul.f32 %v871, %v914
        %v936 = vmul.f32 %v871, %v918
        %v937 = vmul.f32 %v875, %v914
        %v938 = vmul.f32 %v875, %v918
        %v939 = vmul.f32 %v879, %v914
        %v940 = vmul.f32 %v879, %v918
        %v941 = vmul.f32 %v883, %v914
        %v942 = vmul.f32 %v883, %v918
        %v943 = vmul.f32 %v887, %v914
        %v944 = vmul.f32 %v887, %v918
        %v945 = vmul.f32 %v891, %v914
        %v946 = vmul.f32 %v891, %v918
        %v947 = vmul.f32 %v895, %v914
        %v948 = vmul.f32 %v895, %v918
        %v949 = vmul.f32 %v899, %v914
        %v950 = vmul.f32 %v899, %v918
        %v951 = vadd.f32 %v805, %v919
        %v952 = vadd.f32 %v806, %v920
        %v953 = vadd.f32 %v807, %v921
        %v954 = vadd.f32 %v808, %v922
        %v955 = vadd.f32 %v809, %v923
        %v956 = vadd.f32 %v810, %v924
        %v957 = vadd.f32 %v811, %v925
        %v958 = vadd.f32 %v812, %v926
        %v959 = vadd.f32 %v813, %v927
        %v960 = vadd.f32 %v814, %v928
        %v961 = vadd.f32 %v815, %v929
        %v962 = vadd.f32 %v816, %v930
        %v963 = vadd.f32 %v817, %v931
        %v964 = vadd.f32 %v818, %v932
        %v965 = vadd.f32 %v819, %v933
        %v966 = vadd.f32 %v820, %v934
        %v967 = vadd.f32 %v821, %v935
        %v968 = vadd.f32 %v822, %v936
        %v969 = vadd.f32 %v823, %v937
        %v970 = vadd.f32 %v824, %v938
        %v971 = vadd.f32 %v825, %v939
        %v972 = vadd.f32 %v826, %v940
        %v973 = vadd.f32 %v827, %v941
        %v974 = vadd.f32 %v828, %v942
        %v975 = vadd.f32 %v829, %v943
        %v976 = vadd.f32 %v830, %v944
        %v977 = vadd.f32 %v831, %v945
        %v978 = vadd.f32 %v832, %v946
        %v979 = vadd.f32 %v833, %v947
        %v980 = vadd.f32 %v834, %v948
        %v981 = vadd.f32 %v835, %v949
        %v982 = vadd.f32 %v836, %v950
        %984 = vset.pattern.permute.xlu0 0
        %985 = vperm.xlu0 %984, %v416
        %v986 = vpop.permute.xlu0 %985
        %989 = vset.pattern.permute.xlu0 0
        %990 = vperm.xlu0 %989, %v417
        %v991 = vpop.permute.xlu0 %990
        %994 = vset.pattern.permute.xlu0 0
        %995 = vperm.xlu0 %994, %v418
        %v996 = vpop.permute.xlu0 %995
        %999 = vset.pattern.permute.xlu0 0
        %1000 = vperm.xlu0 %999, %v419
        %v1001 = vpop.permute.xlu0 %1000
        %1004 = vset.pattern.permute.xlu0 0
        %1005 = vperm.xlu0 %1004, %v420
        %v1006 = vpop.permute.xlu0 %1005
        %1009 = vset.pattern.permute.xlu0 0
        %1010 = vperm.xlu0 %1009, %v421
        %v1011 = vpop.permute.xlu0 %1010
        %1014 = vset.pattern.permute.xlu0 0
        %1015 = vperm.xlu0 %1014, %v422
        %v1016 = vpop.permute.xlu0 %1015
        %1019 = vset.pattern.permute.xlu0 0
        %1020 = vperm.xlu0 %1019, %v423
        %v1021 = vpop.permute.xlu0 %1020
        %1024 = vset.pattern.permute.xlu0 0
        %1025 = vperm.xlu0 %1024, %v424
        %v1026 = vpop.permute.xlu0 %1025
        %1029 = vset.pattern.permute.xlu0 0
        %1030 = vperm.xlu0 %1029, %v425
        %v1031 = vpop.permute.xlu0 %1030
        %1034 = vset.pattern.permute.xlu0 0
        %1035 = vperm.xlu0 %1034, %v426
        %v1036 = vpop.permute.xlu0 %1035
        %1039 = vset.pattern.permute.xlu0 0
        %1040 = vperm.xlu0 %1039, %v427
        %v1041 = vpop.permute.xlu0 %1040
        %1044 = vset.pattern.permute.xlu0 0
        %1045 = vperm.xlu0 %1044, %v428
        %v1046 = vpop.permute.xlu0 %1045
        %1049 = vset.pattern.permute.xlu0 0
        %1050 = vperm.xlu0 %1049, %v429
        %v1051 = vpop.permute.xlu0 %1050
        %1054 = vset.pattern.permute.xlu0 0
        %1055 = vperm.xlu0 %1054, %v430
        %v1056 = vpop.permute.xlu0 %1055
        %1059 = vset.pattern.permute.xlu0 0
        %1060 = vperm.xlu0 %1059, %v431
        %v1061 = vpop.permute.xlu0 %1060
        %v1064 = vlaneseq
        %v1065 = vshrl.u32 %v1064, 7
        %v1066 = vsub.s32 0, %v1065
        %v1067 = vrot.slane %v399, %v1066
        %v1068 = vlaneseq
        %v1069 = vshrl.u32 %v1068, 7
        %v1070 = vsub.s32 1, %v1069
        %v1071 = vrot.slane %v399, %v1070
        %v1074 = vmul.f32 %v986, %v1067
        %v1075 = vmul.f32 %v986, %v1071
        %v1076 = vmul.f32 %v991, %v1067
        %v1077 = vmul.f32 %v991, %v1071
        %v1078 = vmul.f32 %v996, %v1067
        %v1079 = vmul.f32 %v996, %v1071
        %v1080 = vmul.f32 %v1001, %v1067
        %v1081 = vmul.f32 %v1001, %v1071
        %v1082 = vmul.f32 %v1006, %v1067
        %v1083 = vmul.f32 %v1006, %v1071
        %v1084 = vmul.f32 %v1011, %v1067
        %v1085 = vmul.f32 %v1011, %v1071
        %v1086 = vmul.f32 %v1016, %v1067
        %v1087 = vmul.f32 %v1016, %v1071
        %v1088 = vmul.f32 %v1021, %v1067
        %v1089 = vmul.f32 %v1021, %v1071
        %v1090 = vmul.f32 %v1026, %v1067
        %v1091 = vmul.f32 %v1026, %v1071
        %v1092 = vmul.f32 %v1031, %v1067
        %v1093 = vmul.f32 %v1031, %v1071
        %v1094 = vmul.f32 %v1036, %v1067
        %v1095 = vmul.f32 %v1036, %v1071
        %v1096 = vmul.f32 %v1041, %v1067
        %v1097 = vmul.f32 %v1041, %v1071
        %v1098 = vmul.f32 %v1046, %v1067
        %v1099 = vmul.f32 %v1046, %v1071
        %v1100 = vmul.f32 %v1051, %v1067
        %v1101 = vmul.f32 %v1051, %v1071
        %v1102 = vmul.f32 %v1056, %v1067
        %v1103 = vmul.f32 %v1056, %v1071
        %v1104 = vmul.f32 %v1061, %v1067
        %v1105 = vmul.f32 %v1061, %v1071
        %v1106 = vadd.f32 %v951, %v1074
        %v1107 = vadd.f32 %v952, %v1075
        %v1108 = vadd.f32 %v953, %v1076
        %v1109 = vadd.f32 %v954, %v1077
        %v1110 = vadd.f32 %v955, %v1078
        %v1111 = vadd.f32 %v956, %v1079
        %v1112 = vadd.f32 %v957, %v1080
        %v1113 = vadd.f32 %v958, %v1081
        %v1114 = vadd.f32 %v959, %v1082
        %v1115 = vadd.f32 %v960, %v1083
        %v1116 = vadd.f32 %v961, %v1084
        %v1117 = vadd.f32 %v962, %v1085
        %v1118 = vadd.f32 %v963, %v1086
        %v1119 = vadd.f32 %v964, %v1087
        %v1120 = vadd.f32 %v965, %v1088
        %v1121 = vadd.f32 %v966, %v1089
        %v1122 = vadd.f32 %v967, %v1090
        %v1123 = vadd.f32 %v968, %v1091
        %v1124 = vadd.f32 %v969, %v1092
        %v1125 = vadd.f32 %v970, %v1093
        %v1126 = vadd.f32 %v971, %v1094
        %v1127 = vadd.f32 %v972, %v1095
        %v1128 = vadd.f32 %v973, %v1096
        %v1129 = vadd.f32 %v974, %v1097
        %v1130 = vadd.f32 %v975, %v1098
        %v1131 = vadd.f32 %v976, %v1099
        %v1132 = vadd.f32 %v977, %v1100
        %v1133 = vadd.f32 %v978, %v1101
        %v1134 = vadd.f32 %v979, %v1102
        %v1135 = vadd.f32 %v980, %v1103
        %v1136 = vadd.f32 %v981, %v1104
        %v1137 = vadd.f32 %v982, %v1105
        %v1138 = vmax.f32 %v1106, 0.0
        %v1139 = vmax.f32 %v1107, 0.0
        %v1140 = vmax.f32 %v1108, 0.0
        %v1141 = vmax.f32 %v1109, 0.0
        %v1142 = vmax.f32 %v1110, 0.0
        %v1143 = vmax.f32 %v1111, 0.0
        %v1144 = vmax.f32 %v1112, 0.0
        %v1145 = vmax.f32 %v1113, 0.0
        %v1146 = vmax.f32 %v1114, 0.0
        %v1147 = vmax.f32 %v1115, 0.0
        %v1148 = vmax.f32 %v1116, 0.0
        %v1149 = vmax.f32 %v1117, 0.0
        %v1150 = vmax.f32 %v1118, 0.0
        %v1151 = vmax.f32 %v1119, 0.0
        %v1152 = vmax.f32 %v1120, 0.0
        %v1153 = vmax.f32 %v1121, 0.0
        %v1154 = vmax.f32 %v1122, 0.0
        %v1155 = vmax.f32 %v1123, 0.0
        %v1156 = vmax.f32 %v1124, 0.0
        %v1157 = vmax.f32 %v1125, 0.0
        %v1158 = vmax.f32 %v1126, 0.0
        %v1159 = vmax.f32 %v1127, 0.0
        %v1160 = vmax.f32 %v1128, 0.0
        %v1161 = vmax.f32 %v1129, 0.0
        %v1162 = vmax.f32 %v1130, 0.0
        %v1163 = vmax.f32 %v1131, 0.0
        %v1164 = vmax.f32 %v1132, 0.0
        %v1165 = vmax.f32 %v1133, 0.0
        %v1166 = vmax.f32 %v1134, 0.0
        %v1167 = vmax.f32 %v1135, 0.0
        %v1168 = vmax.f32 %v1136, 0.0
        %v1169 = vmax.f32 %v1137, 0.0
        %v1170 = vld [vmem:[%s5] sm:$0xff]
        %v1171 = vld [vmem:[%s5 + $0x8] sm:$0xff]
        %v1172 = vld [vmem:[%s5 + $0x10] sm:$0xff]
        %v1173 = vld [vmem:[%s5 + $0x18] sm:$0xff]
        %v1174 = vld [vmem:[%s5 + $0x20] sm:$0xff]
        %v1175 = vld [vmem:[%s5 + $0x28] sm:$0xff]
        %v1176 = vld [vmem:[%s5 + $0x30] sm:$0xff]
        %v1177 = vld [vmem:[%s5 + $0x38] sm:$0xff]
        %v1178 = vld [vmem:[%s5 + $0x40] sm:$0xff]
        %v1179 = vld [vmem:[%s5 + $0x48] sm:$0xff]
        %v1180 = vld [vmem:[%s5 + $0x50] sm:$0xff]
        %v1181 = vld [vmem:[%s5 + $0x58] sm:$0xff]
        %v1182 = vld [vmem:[%s5 + $0x60] sm:$0xff]
        %v1183 = vld [vmem:[%s5 + $0x68] sm:$0xff]
        %v1184 = vld [vmem:[%s5 + $0x70] sm:$0xff]
        %v1185 = vld [vmem:[%s5 + $0x78] sm:$0xff]
        %v1186 = vld [vmem:[%s6] sm:$0xff]
        %v1187 = vld [vmem:[%s6 + $0x8] sm:$0xff]
        %v1188 = vld [vmem:[%s6 + $0x10] sm:$0xff]
        %v1189 = vld [vmem:[%s6 + $0x18] sm:$0xff]
        %v1190 = vld [vmem:[%s6 + $0x20] sm:$0xff]
        %v1191 = vld [vmem:[%s6 + $0x28] sm:$0xff]
        %v1192 = vld [vmem:[%s6 + $0x30] sm:$0xff]
        %v1193 = vld [vmem:[%s6 + $0x38] sm:$0xff]
        %v1194 = vld [vmem:[%s6 + $0x40] sm:$0xff]
        %v1195 = vld [vmem:[%s6 + $0x48] sm:$0xff]
        %v1196 = vld [vmem:[%s6 + $0x50] sm:$0xff]
        %v1197 = vld [vmem:[%s6 + $0x58] sm:$0xff]
        %v1198 = vld [vmem:[%s6 + $0x60] sm:$0xff]
        %v1199 = vld [vmem:[%s6 + $0x68] sm:$0xff]
        %v1200 = vld [vmem:[%s6 + $0x70] sm:$0xff]
        %v1201 = vld [vmem:[%s6 + $0x78] sm:$0xff]
        %1203 = vset.pattern.permute.xlu0 0
        %1204 = vperm.xlu0 %1203, %v1186
        %v1205 = vpop.permute.xlu0 %1204
        %1208 = vset.pattern.permute.xlu0 0
        %1209 = vperm.xlu0 %1208, %v1187
        %v1210 = vpop.permute.xlu0 %1209
        %1213 = vset.pattern.permute.xlu0 0
        %1214 = vperm.xlu0 %1213, %v1188
        %v1215 = vpop.permute.xlu0 %1214
        %1218 = vset.pattern.permute.xlu0 0
        %1219 = vperm.xlu0 %1218, %v1189
        %v1220 = vpop.permute.xlu0 %1219
        %1223 = vset.pattern.permute.xlu0 0
        %1224 = vperm.xlu0 %1223, %v1190
        %v1225 = vpop.permute.xlu0 %1224
        %1228 = vset.pattern.permute.xlu0 0
        %1229 = vperm.xlu0 %1228, %v1191
        %v1230 = vpop.permute.xlu0 %1229
        %1233 = vset.pattern.permute.xlu0 0
        %1234 = vperm.xlu0 %1233, %v1192
        %v1235 = vpop.permute.xlu0 %1234
        %1238 = vset.pattern.permute.xlu0 0
        %1239 = vperm.xlu0 %1238, %v1193
        %v1240 = vpop.permute.xlu0 %1239
        %1243 = vset.pattern.permute.xlu0 0
        %1244 = vperm.xlu0 %1243, %v1194
        %v1245 = vpop.permute.xlu0 %1244
        %1248 = vset.pattern.permute.xlu0 0
        %1249 = vperm.xlu0 %1248, %v1195
        %v1250 = vpop.permute.xlu0 %1249
        %1253 = vset.pattern.permute.xlu0 0
        %1254 = vperm.xlu0 %1253, %v1196
        %v1255 = vpop.permute.xlu0 %1254
        %1258 = vset.pattern.permute.xlu0 0
        %1259 = vperm.xlu0 %1258, %v1197
        %v1260 = vpop.permute.xlu0 %1259
        %1263 = vset.pattern.permute.xlu0 0
        %1264 = vperm.xlu0 %1263, %v1198
        %v1265 = vpop.permute.xlu0 %1264
        %1268 = vset.pattern.permute.xlu0 0
        %1269 = vperm.xlu0 %1268, %v1199
        %v1270 = vpop.permute.xlu0 %1269
        %1273 = vset.pattern.permute.xlu0 0
        %1274 = vperm.xlu0 %1273, %v1200
        %v1275 = vpop.permute.xlu0 %1274
        %1278 = vset.pattern.permute.xlu0 0
        %1279 = vperm.xlu0 %1278, %v1201
        %v1280 = vpop.permute.xlu0 %1279
        %1282 = vmatprep.subr.mxu0 %v1139
        %1283 = vmatpush1.msra.mxu0 %v1138
        %1284 = vmatprep.subr.mxu0 %v1141
        %1285 = vmatpush1.msra.mxu0 %v1140
        %1286 = vmatprep.subr.mxu0 %v1143
        %1287 = vmatpush1.msra.mxu0 %v1142
        %1288 = vmatprep.subr.mxu0 %v1145
        %1289 = vmatpush1.msra.mxu0 %v1144
        %1290 = vmatprep.subr.mxu0 %v1147
        %1291 = vmatpush1.msra.mxu0 %v1146
        %1292 = vmatprep.subr.mxu0 %v1149
        %1293 = vmatpush1.msra.mxu0 %v1148
        %1294 = vmatprep.subr.mxu0 %v1151
        %1295 = vmatpush1.msra.mxu0 %v1150
        %1296 = vmatprep.subr.mxu0 %v1153
        %1297 = vmatpush1.msra.mxu0 %v1152
        %1298 = vmatprep.subr.mxu0 %v1155
        %1299 = vmatpush1.msra.mxu0 %v1154
        %1300 = vmatprep.subr.mxu0 %v1157
        %1301 = vmatpush1.msra.mxu0 %v1156
        %1302 = vmatprep.subr.mxu0 %v1159
        %1303 = vmatpush1.msra.mxu0 %v1158
        %1304 = vmatprep.subr.mxu0 %v1161
        %1305 = vmatpush1.msra.mxu0 %v1160
        %1306 = vmatprep.subr.mxu0 %v1163
        %1307 = vmatpush1.msra.mxu0 %v1162
        %1308 = vmatprep.subr.mxu0 %v1165
        %1309 = vmatpush1.msra.mxu0 %v1164
        %1310 = vmatprep.subr.mxu0 %v1167
        %1311 = vmatpush1.msra.mxu0 %v1166
        %1312 = vmatprep.subr.mxu0 %v1169
        %1313 = vmatpush1.msra.mxu0 %v1168
        %1314 = vmatprep.subr.mxu0 0.0
        %1315 = vmatpush1.msra.mxu0 0.0
        %1316 = vmatprep.subr.mxu0 0.0
        %1317 = vmatpush1.msra.mxu0 0.0
        %1318 = vmatprep.subr.mxu0 0.0
        %1319 = vmatpush1.msra.mxu0 0.0
        %1320 = vmatprep.subr.mxu0 0.0
        %1321 = vmatpush1.msra.mxu0 0.0
        %1322 = vmatprep.subr.mxu0 0.0
        %1323 = vmatpush1.msra.mxu0 0.0
        %1324 = vmatprep.subr.mxu0 0.0
        %1325 = vmatpush1.msra.mxu0 0.0
        %1326 = vmatprep.subr.mxu0 0.0
        %1327 = vmatpush1.msra.mxu0 0.0
        %1328 = vmatprep.subr.mxu0 0.0
        %1329 = vmatpush1.msra.mxu0 0.0
        %1330 = vmatprep.subr.mxu0 0.0
        %1331 = vmatpush1.msra.mxu0 0.0
        %1332 = vmatprep.subr.mxu0 0.0
        %1333 = vmatpush1.msra.mxu0 0.0
        %1334 = vmatprep.subr.mxu0 0.0
        %1335 = vmatpush1.msra.mxu0 0.0
        %1336 = vmatprep.subr.mxu0 0.0
        %1337 = vmatpush1.msra.mxu0 0.0
        %1338 = vmatprep.subr.mxu0 0.0
        %1339 = vmatpush1.msra.mxu0 0.0
        %1340 = vmatprep.subr.mxu0 0.0
        %1341 = vmatpush1.msra.mxu0 0.0
        %1342 = vmatprep.subr.mxu0 0.0
        %1343 = vmatpush1.msra.mxu0 0.0
        %1344 = vmatprep.subr.mxu0 0.0
        %1345 = vmatpush1.msra.mxu0 0.0
        %1346 = vmatprep.mubr.f32.mxu0 0.0
        %1347 = vmatmul.mubr.f32.gmra.mrb[0].mxu0 %v1170
        %v1348 = vpop.f32.mrb[0].mxu0
        %v1349 = vadd.f32 %v1205, %v1348
        %v1350 = vpop.f32.mrb[0].mxu0
        %v1351 = vadd.f32 %v1205, %v1350
        %1352 = vmatprep.mubr.f32.mxu0 0.0
        %1353 = vmatmul.mubr.f32.gmra.mrb[0].mxu0 %v1171
        %v1354 = vpop.f32.mrb[0].mxu0
        %v1355 = vadd.f32 %v1210, %v1354
        %v1356 = vpop.f32.mrb[0].mxu0
        %v1357 = vadd.f32 %v1210, %v1356
        %1358 = vmatprep.mubr.f32.mxu0 0.0
        %1359 = vmatmul.mubr.f32.gmra.mrb[0].mxu0 %v1172
        %v1360 = vpop.f32.mrb[0].mxu0
        %v1361 = vadd.f32 %v1215, %v1360
        %v1362 = vpop.f32.mrb[0].mxu0
        %v1363 = vadd.f32 %v1215, %v1362
        %1364 = vmatprep.mubr.f32.mxu0 0.0
        %1365 = vmatmul.mubr.f32.gmra.mrb[0].mxu0 %v1173
        %v1366 = vpop.f32.mrb[0].mxu0
        %v1367 = vadd.f32 %v1220, %v1366
        %v1368 = vpop.f32.mrb[0].mxu0
        %v1369 = vadd.f32 %v1220, %v1368
        %1370 = vmatprep.mubr.f32.mxu0 0.0
        %1371 = vmatmul.mubr.f32.gmra.mrb[0].mxu0 %v1174
        %v1372 = vpop.f32.mrb[0].mxu0
        %v1373 = vadd.f32 %v1225, %v1372
        %v1374 = vpop.f32.mrb[0].mxu0
        %v1375 = vadd.f32 %v1225, %v1374
        %1376 = vmatprep.mubr.f32.mxu0 0.0
        %1377 = vmatmul.mubr.f32.gmra.mrb[0].mxu0 %v1175
        %v1378 = vpop.f32.mrb[0].mxu0
        %v1379 = vadd.f32 %v1230, %v1378
        %v1380 = vpop.f32.mrb[0].mxu0
        %v1381 = vadd.f32 %v1230, %v1380
        %1382 = vmatprep.mubr.f32.mxu0 0.0
        %1383 = vmatmul.mubr.f32.gmra.mrb[0].mxu0 %v1176
        %v1384 = vpop.f32.mrb[0].mxu0
        %v1385 = vadd.f32 %v1235, %v1384
        %v1386 = vpop.f32.mrb[0].mxu0
        %v1387 = vadd.f32 %v1235, %v1386
        %1388 = vmatprep.mubr.f32.mxu0 0.0
        %1389 = vmatmul.mubr.f32.gmra.mrb[0].mxu0 %v1177
        %v1390 = vpop.f32.mrb[0].mxu0
        %v1391 = vadd.f32 %v1240, %v1390
        %v1392 = vpop.f32.mrb[0].mxu0
        %v1393 = vadd.f32 %v1240, %v1392
        %1394 = vmatprep.mubr.f32.mxu0 0.0
        %1395 = vmatmul.mubr.f32.gmra.mrb[0].mxu0 %v1178
        %v1396 = vpop.f32.mrb[0].mxu0
        %v1397 = vadd.f32 %v1245, %v1396
        %v1398 = vpop.f32.mrb[0].mxu0
        %v1399 = vadd.f32 %v1245, %v1398
        %1400 = vmatprep.mubr.f32.mxu0 0.0
        %1401 = vmatmul.mubr.f32.gmra.mrb[0].mxu0 %v1179
        %v1402 = vpop.f32.mrb[0].mxu0
        %v1403 = vadd.f32 %v1250, %v1402
        %v1404 = vpop.f32.mrb[0].mxu0
        %v1405 = vadd.f32 %v1250, %v1404
        %1406 = vmatprep.mubr.f32.mxu0 0.0
        %1407 = vmatmul.mubr.f32.gmra.mrb[0].mxu0 %v1180
        %v1408 = vpop.f32.mrb[0].mxu0
        %v1409 = vadd.f32 %v1255, %v1408
        %v1410 = vpop.f32.mrb[0].mxu0
        %v1411 = vadd.f32 %v1255, %v1410
        %1412 = vmatprep.mubr.f32.mxu0 0.0
        %1413 = vmatmul.mubr.f32.gmra.mrb[0].mxu0 %v1181
        %v1414 = vpop.f32.mrb[0].mxu0
        %v1415 = vadd.f32 %v1260, %v1414
        %v1416 = vpop.f32.mrb[0].mxu0
        %v1417 = vadd.f32 %v1260, %v1416
        %1418 = vmatprep.mubr.f32.mxu0 0.0
        %1419 = vmatmul.mubr.f32.gmra.mrb[0].mxu0 %v1182
        %v1420 = vpop.f32.mrb[0].mxu0
        %v1421 = vadd.f32 %v1265, %v1420
        %v1422 = vpop.f32.mrb[0].mxu0
        %v1423 = vadd.f32 %v1265, %v1422
        %1424 = vmatprep.mubr.f32.mxu0 0.0
        %1425 = vmatmul.mubr.f32.gmra.mrb[0].mxu0 %v1183
        %v1426 = vpop.f32.mrb[0].mxu0
        %v1427 = vadd.f32 %v1270, %v1426
        %v1428 = vpop.f32.mrb[0].mxu0
        %v1429 = vadd.f32 %v1270, %v1428
        %1430 = vmatprep.mubr.f32.mxu0 0.0
        %1431 = vmatmul.mubr.f32.gmra.mrb[0].mxu0 %v1184
        %v1432 = vpop.f32.mrb[0].mxu0
        %v1433 = vadd.f32 %v1275, %v1432
        %v1434 = vpop.f32.mrb[0].mxu0
        %v1435 = vadd.f32 %v1275, %v1434
        %1436 = vmatprep.mubr.f32.mxu0 0.0
        %1437 = vmatmul.mubr.f32.gmra.mrb[0].mxu0 %v1185
        %v1438 = vpop.f32.mrb[0].mxu0
        %v1439 = vadd.f32 %v1280, %v1438
        %v1440 = vpop.f32.mrb[0].mxu0
        %v1441 = vadd.f32 %v1280, %v1440
        %1442 = vdwg.mxu0
        %v1443 = vmax.f32 %v1349, 0.0
        %v1444 = vmax.f32 %v1351, 0.0
        %v1445 = vmax.f32 %v1355, 0.0
        %v1446 = vmax.f32 %v1357, 0.0
        %v1447 = vmax.f32 %v1361, 0.0
        %v1448 = vmax.f32 %v1363, 0.0
        %v1449 = vmax.f32 %v1367, 0.0
        %v1450 = vmax.f32 %v1369, 0.0
        %v1451 = vmax.f32 %v1373, 0.0
        %v1452 = vmax.f32 %v1375, 0.0
        %v1453 = vmax.f32 %v1379, 0.0
        %v1454 = vmax.f32 %v1381, 0.0
        %v1455 = vmax.f32 %v1385, 0.0
        %v1456 = vmax.f32 %v1387, 0.0
        %v1457 = vmax.f32 %v1391, 0.0
        %v1458 = vmax.f32 %v1393, 0.0
        %v1459 = vmax.f32 %v1397, 0.0
        %v1460 = vmax.f32 %v1399, 0.0
        %v1461 = vmax.f32 %v1403, 0.0
        %v1462 = vmax.f32 %v1405, 0.0
        %v1463 = vmax.f32 %v1409, 0.0
        %v1464 = vmax.f32 %v1411, 0.0
        %v1465 = vmax.f32 %v1415, 0.0
        %v1466 = vmax.f32 %v1417, 0.0
        %v1467 = vmax.f32 %v1421, 0.0
        %v1468 = vmax.f32 %v1423, 0.0
        %v1469 = vmax.f32 %v1427, 0.0
        %v1470 = vmax.f32 %v1429, 0.0
        %v1471 = vmax.f32 %v1433, 0.0
        %v1472 = vmax.f32 %v1435, 0.0
        %v1473 = vmax.f32 %v1439, 0.0
        %v1474 = vmax.f32 %v1441, 0.0
        %v1475 = vld [vmem:[%s7] sm:$0xff]
        %v1476 = vld [vmem:[%s7 + $0x8] sm:$0xff]
        %v1477 = vld [vmem:[%s7 + $0x10] sm:$0xff]
        %v1478 = vld [vmem:[%s7 + $0x18] sm:$0xff]
        %v1479 = vld [vmem:[%s7 + $0x20] sm:$0xff]
        %v1480 = vld [vmem:[%s7 + $0x28] sm:$0xff]
        %v1481 = vld [vmem:[%s7 + $0x30] sm:$0xff]
        %v1482 = vld [vmem:[%s7 + $0x38] sm:$0xff]
        %v1483 = vld [vmem:[%s7 + $0x40] sm:$0xff]
        %v1484 = vld [vmem:[%s7 + $0x48] sm:$0xff]
        %v1485 = vld [vmem:[%s7 + $0x50] sm:$0xff]
        %v1486 = vld [vmem:[%s7 + $0x58] sm:$0xff]
        %v1487 = vld [vmem:[%s7 + $0x60] sm:$0xff]
        %v1488 = vld [vmem:[%s7 + $0x68] sm:$0xff]
        %v1489 = vld [vmem:[%s7 + $0x70] sm:$0xff]
        %v1490 = vld [vmem:[%s7 + $0x78] sm:$0xff]
        %1492 = vset.pattern.permute.xlu0 0
        %1493 = vperm.xlu0 %1492, %v1475
        %v1494 = vpop.permute.xlu0 %1493
        %1497 = vset.pattern.permute.xlu0 0
        %1498 = vperm.xlu0 %1497, %v1476
        %v1499 = vpop.permute.xlu0 %1498
        %1502 = vset.pattern.permute.xlu0 0
        %1503 = vperm.xlu0 %1502, %v1477
        %v1504 = vpop.permute.xlu0 %1503
        %1507 = vset.pattern.permute.xlu0 0
        %1508 = vperm.xlu0 %1507, %v1478
        %v1509 = vpop.permute.xlu0 %1508
        %1512 = vset.pattern.permute.xlu0 0
        %1513 = vperm.xlu0 %1512, %v1479
        %v1514 = vpop.permute.xlu0 %1513
        %1517 = vset.pattern.permute.xlu0 0
        %1518 = vperm.xlu0 %1517, %v1480
        %v1519 = vpop.permute.xlu0 %1518
        %1522 = vset.pattern.permute.xlu0 0
        %1523 = vperm.xlu0 %1522, %v1481
        %v1524 = vpop.permute.xlu0 %1523
        %1527 = vset.pattern.permute.xlu0 0
        %1528 = vperm.xlu0 %1527, %v1482
        %v1529 = vpop.permute.xlu0 %1528
        %1532 = vset.pattern.permute.xlu0 0
        %1533 = vperm.xlu0 %1532, %v1483
        %v1534 = vpop.permute.xlu0 %1533
        %1537 = vset.pattern.permute.xlu0 0
        %1538 = vperm.xlu0 %1537, %v1484
        %v1539 = vpop.permute.xlu0 %1538
        %1542 = vset.pattern.permute.xlu0 0
        %1543 = vperm.xlu0 %1542, %v1485
        %v1544 = vpop.permute.xlu0 %1543
        %1547 = vset.pattern.permute.xlu0 0
        %1548 = vperm.xlu0 %1547, %v1486
        %v1549 = vpop.permute.xlu0 %1548
        %1552 = vset.pattern.permute.xlu0 0
        %1553 = vperm.xlu0 %1552, %v1487
        %v1554 = vpop.permute.xlu0 %1553
        %1557 = vset.pattern.permute.xlu0 0
        %1558 = vperm.xlu0 %1557, %v1488
        %v1559 = vpop.permute.xlu0 %1558
        %1562 = vset.pattern.permute.xlu0 0
        %1563 = vperm.xlu0 %1562, %v1489
        %v1564 = vpop.permute.xlu0 %1563
        %1567 = vset.pattern.permute.xlu0 0
        %1568 = vperm.xlu0 %1567, %v1490
        %v1569 = vpop.permute.xlu0 %1568
        %v1571 = vmul.f32 %v1443, %v1494
        %v1572 = vmul.f32 %v1444, %v1494
        %v1573 = vmul.f32 %v1445, %v1499
        %v1574 = vmul.f32 %v1446, %v1499
        %v1575 = vmul.f32 %v1447, %v1504
        %v1576 = vmul.f32 %v1448, %v1504
        %v1577 = vmul.f32 %v1449, %v1509
        %v1578 = vmul.f32 %v1450, %v1509
        %v1579 = vmul.f32 %v1451, %v1514
        %v1580 = vmul.f32 %v1452, %v1514
        %v1581 = vmul.f32 %v1453, %v1519
        %v1582 = vmul.f32 %v1454, %v1519
        %v1583 = vmul.f32 %v1455, %v1524
        %v1584 = vmul.f32 %v1456, %v1524
        %v1585 = vmul.f32 %v1457, %v1529
        %v1586 = vmul.f32 %v1458, %v1529
        %v1587 = vmul.f32 %v1459, %v1534
        %v1588 = vmul.f32 %v1460, %v1534
        %v1589 = vmul.f32 %v1461, %v1539
        %v1590 = vmul.f32 %v1462, %v1539
        %v1591 = vmul.f32 %v1463, %v1544
        %v1592 = vmul.f32 %v1464, %v1544
        %v1593 = vmul.f32 %v1465, %v1549
        %v1594 = vmul.f32 %v1466, %v1549
        %v1595 = vmul.f32 %v1467, %v1554
        %v1596 = vmul.f32 %v1468, %v1554
        %v1597 = vmul.f32 %v1469, %v1559
        %v1598 = vmul.f32 %v1470, %v1559
        %v1599 = vmul.f32 %v1471, %v1564
        %v1600 = vmul.f32 %v1472, %v1564
        %v1601 = vmul.f32 %v1473, %v1569
        %v1602 = vmul.f32 %v1474, %v1569
        %v1603 = vadd.f32 %v1571, %v1573
        %v1604 = vadd.f32 %v1603, %v1575
        %v1605 = vadd.f32 %v1604, %v1577
        %v1606 = vadd.f32 %v1605, %v1579
        %v1607 = vadd.f32 %v1606, %v1581
        %v1608 = vadd.f32 %v1607, %v1583
        %v1609 = vadd.f32 %v1608, %v1585
        %v1610 = vadd.f32 %v1609, %v1587
        %v1611 = vadd.f32 %v1610, %v1589
        %v1612 = vadd.f32 %v1611, %v1591
        %v1613 = vadd.f32 %v1612, %v1593
        %v1614 = vadd.f32 %v1613, %v1595
        %v1615 = vadd.f32 %v1614, %v1597
        %v1616 = vadd.f32 %v1615, %v1599
        %v1617 = vadd.f32 %v1616, %v1601
        %v1618 = vrot.slane %v1617, 4
        %v1619 = vadd.f32 %v1617, %v1618
        %v1620 = vrot.slane %v1619, 2
        %v1621 = vadd.f32 %v1619, %v1620
        %v1622 = vrot.slane %v1621, 1
        %v1623 = vadd.f32 %v1621, %v1622
        %v1624 = vadd.f32 %v1572, %v1574
        %v1625 = vadd.f32 %v1624, %v1576
        %v1626 = vadd.f32 %v1625, %v1578
        %v1627 = vadd.f32 %v1626, %v1580
        %v1628 = vadd.f32 %v1627, %v1582
        %v1629 = vadd.f32 %v1628, %v1584
        %v1630 = vadd.f32 %v1629, %v1586
        %v1631 = vadd.f32 %v1630, %v1588
        %v1632 = vadd.f32 %v1631, %v1590
        %v1633 = vadd.f32 %v1632, %v1592
        %v1634 = vadd.f32 %v1633, %v1594
        %v1635 = vadd.f32 %v1634, %v1596
        %v1636 = vadd.f32 %v1635, %v1598
        %v1637 = vadd.f32 %v1636, %v1600
        %v1638 = vadd.f32 %v1637, %v1602
        %v1639 = vrot.slane %v1638, 4
        %v1640 = vadd.f32 %v1638, %v1639
        %v1641 = vrot.slane %v1640, 2
        %v1642 = vadd.f32 %v1640, %v1641
        %v1643 = vrot.slane %v1642, 1
        %v1644 = vadd.f32 %v1642, %v1643
        %s1645 = sld [smem:[#allocation2]]
        %v1646 = vstv %s1645
        %v1647 = vadd.f32 %v1623, %v1646
        %v1648 = vadd.f32 %v1644, %v1646
        %v1651 = vcombine.low %v1647, %v1648
        %v1653 = vunpack.c.l.s4 1966171168
        %v1654 = vunpack.c.0.s8 %v1653
        %v1655 = vlaneseq
        %v1656 = vshrl.u32 %v1655, 7
        %v1657 = vsub.s32 %v1654, %v1656
        %v1658 = vrot.slane %v1651, %v1657
        %v1660 = vunpack.c.l.s4 1966171168
        %v1661 = vunpack.c.0.s8 %v1660
        %v1662 = vlaneseq
        %v1663 = vshrl.u32 %v1662, 7
        %v1664 = vsub.s32 %v1661, %v1663
        %v1665 = vrot.slane %v1658, %v1664
        %v1667 = vlaneseq
        %vm1668 = vcmp.ge.s32.totalorder %v1667, 0
        %vm1669 = vcmp.lt.s32.totalorder %v1667, 256
        %vm1670 = vmand %vm1668, %vm1669
        %1671 = vst.msk [vmem:[%s365] sm:$0x3] %vm1670, %v1665
        %s1672 = sand.u32 %s231, 1
        %s1673 = scalar_lea.sflag [#allocation4], %s1672
        %s1674 = sand.u32 %s231, 1
        %s1675 = smul.addr %s1674, 2
        %s1676 = scalar_lea.vmem [#allocation3], %s1675
        // Predicated region
        $region57: #{tpu_custom_call.1} parent=55 // pred_check
          %p1677 = pneg %p241
        $region58: #{tpu_custom_call.1} parent=55 // pred_check_branch
          %1679 = sbr.rel (%p1677) target = $region60
        $region59: #{tpu_custom_call.1} parent=55 // pred_region
          %s1680 = smul.u32 2, %s24
          %s1681 = ssub.s32 3, %s1680
          %p1682 = scmp.lt.s32.totalorder %s1681, 2
          %s1683 = scalar_select %p1682, %s1681, 2
          %s1684 = smul.u32 16, %s1683
          %s1686 = ssub.s32 32, %s1684
          %1687 = vsyncadd %s1673, %s1686
          %p1688 = scmp.ne.s32.totalorder 0, %s1684
          %s1689 = smul.addr %s1680, 16
          %s1690 = scalar_lea.hbm %s9, %s1689
          %s1691 = sshll.u32 %s1683, 4
          %s1692 = sshll.u32 %s1676, 4
          %s1693 = int_to_ptr.vmem [resolvable:$true] %s1692
          %1695 = dma.vmem_to_hbm [thread:$0]  (%p1688), %s1693, %s1691, %s1690, %s1673
        $region60: #{tpu_custom_call.1} parent=55 // pred_fallthru
          _
      $region56: #{tpu_custom_call.1} parent=5 // pred_fallthru
        _
      %p1696 = scmp.le.s32.totalorder 2, %s19
      // Predicated region
      $region61: #{tpu_custom_call.1} parent=5 // pred_check
        %p1697 = pneg %p1696
      $region62: #{tpu_custom_call.1} parent=5 // pred_check_branch
        %1699 = sbr.rel (%p1697) target = $region64
      $region63: #{tpu_custom_call.1} parent=5 // pred_region
        %s1700 = ssub.s32 %s19, 2
        // Predicated region
        $region65: #{tpu_custom_call.1} parent=63 // pred_check
          %p1701 = pneg %p247
        $region66: #{tpu_custom_call.1} parent=63 // pred_check_branch
          %1703 = sbr.rel (%p1701) target = $region68
        $region67: #{tpu_custom_call.1} parent=63 // pred_region
          %s1704 = sand.u32 %s232, 1
          %s1705 = scalar_lea.sflag [#allocation4], %s1704
          %s1706 = sand.u32 %s232, 1
          %s1707 = smul.addr %s1706, 2
          %s1708 = scalar_lea.vmem [#allocation3], %s1707
          %1709 = dma.done %s1705, 32
        $region68: #{tpu_custom_call.1} parent=63 // pred_fallthru
          _
      $region64: #{tpu_custom_call.1} parent=5 // pred_fallthru
        _
    $region6: #{tpu_custom_call.1} parent=1 // loop_footer
      %s23 = sadd.s32 1, %s19
    $region7: #{tpu_custom_call.1} parent=1 // loop_footer_branch
      %18 = sbr.rel target = $region3
    $region8: #{tpu_custom_call.1} parent=1 // loop_exit
      _
    %1710 = vsyncpa [#allocation4], 1
    %s1711 = scalar_lea.sflag [#allocation4], 1
    %1712 = vsyncpa %s1711, 1

</llo_original>
